<compile_context>
chip_gen: v5e
topology: v5e:2x2
jax: 0.10.0
libtpu: 0.0.40
codegen_flags: <defaults>
</compile_context>

<pallas_src>
import functools

import jax
import jax.numpy as jnp
import numpy as np
from jax.experimental import pallas as pl
from jax.experimental.pallas import tpu as pltpu

_LANE = 128


def _round_up(x, m):
    return ((x + m - 1) // m) * m


def _pad_to(a, shape):
    cfg = tuple((0, t - s) for s, t in zip(a.shape, shape))
    if any(p for _, p in cfg):
        return jnp.pad(a, cfg)
    return a


def _vmem_budget():
    """(per-step tile budget, vmem_limit_bytes) sized from the chip's VMEM."""
    cap = 128 * 1024 * 1024
    try:
        info = pltpu.get_tpu_info()
        cap = int(getattr(info, "vmem_capacity_bytes", cap) or cap)
    except Exception:
        pass
    limit = min((cap * 3) // 4, 100 * 1024 * 1024)   # v7x: 48 MiB, v5e/v6e: 96 MiB
    return (limit * 7) // 10, limit


def _pick_tile_rows(Hs, Ws, Cin_p, Cmid_p, Cout_p, d, downsample, out_bytes,
                    budget_bytes):
    """Largest TH dividing Hs whose per-step VMEM footprint fits the budget."""
    weights = 2 * 2 * (Cin_p * Cmid_p + 9 * Cmid_p * Cmid_p + Cmid_p * Cout_p
                       + (Cin_p * Cout_p if downsample else 0))

    def est(th):
        th2 = th + 2 * d
        tm, tm2 = th * Ws, th2 * Ws
        xw = th2 * Ws * Cin_p * 2
        return (weights
                + 3 * xw                               # 2x dbl-buffered xbuf + flatten copy
                + tm2 * Cmid_p * (4 + 4 * 2)           # hval f32 + hc/left/right bf16
                + 2 * tm2 * 3 * Cmid_p * 2             # h3 scratch (+ store temp)
                + tm * (Cmid_p * 4 + 3 * Cmid_p * 2    # 3x3 acc + patch load
                        + Cout_p * 8 + Cin_p * 2)      # increase + shortcut + xs
                + 2 * tm * Cout_p * out_bytes)         # output block (dbl-buffered)

    divisors = [t for t in range(Hs, 0, -1) if Hs % t == 0]
    # Output block's second-to-last dim (TH*Ws) must be a multiple of 8 or full.
    valid = [t for t in divisors if t == Hs or (t * Ws) % 8 == 0]
    for t in valid:
        if est(t) <= budget_bytes:
            return t
    return valid[-1]


# ----------------------------------------------------------------------------
# Fused kernel: reduce 1x1 (recomputed over the halo) + dilated 3x3 +
# increase 1x1 + shortcut (1x1 or identity) + residual add + ReLU.
# One (batch image, row-tile) per grid step.
# ----------------------------------------------------------------------------
def _bottleneck_kernel(xp_hbm, wr_ref, br_ref, w3_ref, b3_ref, wi_ref, bi_ref,
                       *rest, TH, Ws, Hs, d, downsample):
    if downsample:
        ws_ref, bs_ref, o_ref, xbuf, h3_ref, sem = rest
    else:
        o_ref, xbuf, h3_ref, sem = rest

    n = pl.program_id(0)
    t = pl.program_id(1)
    nT = pl.num_programs(1)
    TH2 = TH + 2 * d
    TM = TH * Ws
    TM2 = TH2 * Ws
    Cin = wr_ref.shape[0]
    Cmid = wr_ref.shape[1]

    # ---- double-buffered halo DMA of the strided, row-padded input ---------
    def start_dma(slot, tt):
        pltpu.make_async_copy(xp_hbm.at[n, pl.ds(tt * TH, TH2)],
                              xbuf.at[slot], sem.at[slot]).start()

    slot = t % 2

    @pl.when(t == 0)                      # prime the pipeline for this image
    def _():
        start_dma(0, 0)

    pltpu.make_async_copy(xp_hbm.at[0, pl.ds(0, TH2)],   # wait current window
                          xbuf.at[slot], sem.at[slot]).wait()

    @pl.when(t + 1 < nT)                  # prefetch the next row-tile's window
    def _():
        start_dma(1 - slot, t + 1)

    xw = xbuf[slot]                                      # (TH2, Ws, Cin) bf16

    # ---- reduce 1x1 conv, recomputed over the 2d halo rows -----------------
    hval = jnp.dot(xw.reshape(TM2, Cin), wr_ref[...],
                   preferred_element_type=jnp.float32) + br_ref[...]
    hval3 = hval.reshape(TH2, Ws, Cmid)
    # Rows outside the image are the 3x3 conv's zero padding: x there is
    # zero-padded, so only the bias has to be masked off.
    rows = jax.lax.broadcasted_iota(jnp.int32, (TH2, 1, 1), 0) + (t * TH - d)
    row_ok = jnp.logical_and(rows >= 0, rows < Hs)
    hc3 = jnp.where(row_ok, hval3, 0.0).astype(jnp.bfloat16)

    # ---- column-shifted (zero filled) copies: width halo of the 3x3 --------
    zw = jnp.zeros((TH2, d, Cmid), jnp.bfloat16)
    left3 = jnp.concatenate([zw, hc3[:, :Ws - d, :]], axis=1)    # h[., c-d]
    right3 = jnp.concatenate([hc3[:, d:, :], zw], axis=1)        # h[., c+d]
    h3_ref[:, 0 * Cmid:1 * Cmid] = left3.reshape(TM2, Cmid)
    h3_ref[:, 1 * Cmid:2 * Cmid] = hc3.reshape(TM2, Cmid)
    h3_ref[:, 2 * Cmid:3 * Cmid] = right3.reshape(TM2, Cmid)

    # ---- dilated 3x3: 3 accumulating K = 3*Cmid matmuls; the kh taps are
    #      plain leading-dim row slices of h3 --------------------------------
    acc = jnp.zeros((TM, Cmid), jnp.float32)
    for kh in range(3):
        patch = h3_ref[pl.ds(kh * d * Ws, TM), :]
        acc = acc + jnp.dot(patch, w3_ref[kh],
                            preferred_element_type=jnp.float32)
    acc = acc + b3_ref[...]

    # ---- increase 1x1 -------------------------------------------------------
    h2 = jnp.dot(acc.astype(jnp.bfloat16), wi_ref[...],
                 preferred_element_type=jnp.float32) + bi_ref[...]

    # ---- shortcut + residual add + ReLU -------------------------------------
    xs = xw[d:d + TH].reshape(TM, Cin)
    if downsample:
        sc = jnp.dot(xs, ws_ref[...],
                     preferred_element_type=jnp.float32) + bs_ref[...]
    else:
        sc = xs.astype(jnp.float32)       # identity: Cin_p == Cout_p, stride 1
    o_ref[0] = jnp.maximum(h2 + sc, 0.0).astype(o_ref.dtype)


# ----------------------------------------------------------------------------
# Wrapper: Bottleneck.forward
# ----------------------------------------------------------------------------
def bottleneck_forward(x_nchw, params, *, stride, dilation, downsample,
                       out_dtype=jnp.float32):
    wr, br, w3, b3, wi, bi, ws, bs = params
    Cin = x_nchw.shape[1]
    Cmid = wr.shape[1]
    Cout = wi.shape[1]
    d = int(dilation)

    if not downsample:
        assert Cin == Cout and stride == 1, \
            "identity shortcut needs Cin == Cout and stride == 1"

    Cin_p = _round_up(max(Cin, 1), _LANE)
    Cmid_p = _round_up(max(Cmid, 1), _LANE)
    Cout_p = _round_up(max(Cout, 1), _LANE)

    # NCHW -> NHWC, apply the 1x1 stride, pad rows by d (3x3 halo) and
    # channels up to a lane-dense multiple of 128, cast bf16: one XLA pass.
    x = jnp.transpose(x_nchw, (0, 2, 3, 1))
    x_s = x[:, ::stride, ::stride, :]
    N, Hs, Ws, _ = x_s.shape
    assert Ws > d, "feature-map width must exceed the dilation"
    M = Hs * Ws
    xp = jnp.pad(x_s, ((0, 0), (d, d), (0, 0), (0, Cin_p - Cin))
                 ).astype(jnp.bfloat16)

    # Padded / bf16 parameters (zero-padded channels contribute nothing).
    wr_p = _pad_to(wr, (Cin_p, Cmid_p)).astype(jnp.bfloat16)
    br_p = _pad_to(br, (Cmid_p,)).astype(jnp.float32).reshape(1, Cmid_p)
    w3_4 = _pad_to(w3.reshape(3, 3, Cmid, Cmid),
                   (3, 3, Cmid_p, Cmid_p)).astype(jnp.bfloat16)
    w3g_p = w3_4.reshape(3, 3 * Cmid_p, Cmid_p)     # K rows ordered (kw, cin)
    b3_p = _pad_to(b3, (Cmid_p,)).astype(jnp.float32).reshape(1, Cmid_p)
    wi_p = _pad_to(wi, (Cmid_p, Cout_p)).astype(jnp.bfloat16)
    bi_p = _pad_to(bi, (Cout_p,)).astype(jnp.float32).reshape(1, Cout_p)

    out_bytes = jnp.dtype(out_dtype).itemsize
    budget, vmem_limit = _vmem_budget()
    TH = _pick_tile_rows(Hs, Ws, Cin_p, Cmid_p, Cout_p, d, downsample,
                         out_bytes, budget)
    TH2 = TH + 2 * d
    TM = TH * Ws
    TM2 = TH2 * Ws
    nT = Hs // TH

    const2 = lambda n, t: (0, 0)
    in_specs = [
        pl.BlockSpec(memory_space=pl.ANY),                              # xp (HBM)
        pl.BlockSpec((Cin_p, Cmid_p), const2),                          # wr
        pl.BlockSpec((1, Cmid_p), const2),                              # br
        pl.BlockSpec((3, 3 * Cmid_p, Cmid_p), lambda n, t: (0, 0, 0)),  # w3
        pl.BlockSpec((1, Cmid_p), const2),                              # b3
        pl.BlockSpec((Cmid_p, Cout_p), const2),                         # wi
        pl.BlockSpec((1, Cout_p), const2),                              # bi
    ]
    args = [xp, wr_p, br_p, w3g_p, b3_p, wi_p, bi_p]
    if downsample:
        ws_p = _pad_to(ws, (Cin_p, Cout_p)).astype(jnp.bfloat16)
        bs_p = _pad_to(bs, (Cout_p,)).astype(jnp.float32).reshape(1, Cout_p)
        in_specs += [pl.BlockSpec((Cin_p, Cout_p), const2),
                     pl.BlockSpec((1, Cout_p), const2)]
        args += [ws_p, bs_p]

    flops_px = (2 * Cin_p * Cmid_p + 18 * Cmid_p * Cmid_p + 2 * Cmid_p * Cout_p
                + (2 * Cin_p * Cout_p if downsample else 0))
    weight_bytes = sum(int(np.prod(a.shape)) * a.dtype.itemsize
                       for a in args[1:])
    cost = pl.CostEstimate(
        flops=int(N * M * flops_px),
        transcendentals=0,
        bytes_accessed=int(xp.size * 2 + weight_bytes
                           + N * M * Cout_p * out_bytes))

    kern = functools.partial(_bottleneck_kernel, TH=TH, Ws=Ws, Hs=Hs, d=d,
                             downsample=downsample)
    out_flat = pl.pallas_call(
        kern,
        out_shape=jax.ShapeDtypeStruct((N, M, Cout_p), out_dtype),
        grid=(N, nT),
        in_specs=in_specs,
        out_specs=pl.BlockSpec((1, TM, Cout_p), lambda n, t: (n, t, 0)),
        scratch_shapes=[
            pltpu.VMEM((2, TH2, Ws, Cin_p), jnp.bfloat16),   # x halo, 2 slots
            pltpu.VMEM((TM2, 3 * Cmid_p), jnp.bfloat16),     # shifted h copies
            pltpu.SemaphoreType.DMA((2,)),
        ],
        compiler_params=pltpu.CompilerParams(
            dimension_semantics=("parallel", "arbitrary"),
            vmem_limit_bytes=int(vmem_limit)),
        cost_estimate=cost,
    )(*args)

    out = out_flat[:, :, :Cout].reshape(N, Hs, Ws, Cout)
    return jnp.transpose(out, (0, 3, 1, 2))  # NHWC -> NCHW


# ----------------------------------------------------------------------------
# Deterministic parameter init (shapes from Bottleneck.__init__, expansion=4)
# ----------------------------------------------------------------------------
def init_params(key, in_channels, out_channels, expansion=4):
    mid = out_channels // expansion
    ks = jax.random.split(key, 8)

    def w(k, shape, fan_in):
        return jax.random.normal(k, shape, jnp.float32) / jnp.sqrt(float(fan_in))

    wr = w(ks[0], (in_channels, mid), in_channels)            # reduce 1x1
    br = 0.01 * jax.random.normal(ks[1], (mid,), jnp.float32)
    w3 = w(ks[2], (9, mid, mid), 9 * mid)                     # 3x3 (HWIO flattened)
    b3 = 0.01 * jax.random.normal(ks[3], (mid,), jnp.float32)
    wi = w(ks[4], (mid, out_channels), mid)                   # increase 1x1
    bi = 0.01 * jax.random.normal(ks[5], (out_channels,), jnp.float32)
    ws = w(ks[6], (in_channels, out_channels), in_channels)   # shortcut 1x1
    bs = 0.01 * jax.random.normal(ks[7], (out_channels,), jnp.float32)
    return (wr, br, w3, b3, wi, bi, ws, bs)


# ----------------------------------------------------------------------------
# Pure-JAX reference (NHWC, f32) for verification
# ----------------------------------------------------------------------------
def ref_bottleneck_nhwc(x, params, *, stride, dilation, downsample):
    wr, br, w3, b3, wi, bi, ws, bs = params
    mid = wr.shape[1]

    def conv(inp, w4, b, s=1, p=0, dil=1):
        y = jax.lax.conv_general_dilated(
            inp, w4, window_strides=(s, s),
            padding=[(p, p), (p, p)], rhs_dilation=(dil, dil),
            dimension_numbers=("NHWC", "HWIO", "NHWC"))
        return y + b

    h = conv(x, wr.reshape(1, 1, *wr.shape), br, s=stride)
    h = conv(h, w3.reshape(3, 3, mid, mid), b3, p=dilation, dil=dilation)
    h = conv(h, wi.reshape(1, 1, *wi.shape), bi)
    sc = conv(x, ws.reshape(1, 1, *ws.shape), bs, s=stride) if downsample else x
    return jnp.maximum(h + sc, 0.0)


if __name__ == "__main__":
    key = jax.random.PRNGKey(0)

    configs = [
        # (N, Cin, H, W, Cout, stride, dilation, downsample)
        (2, 8, 16, 16, 16, 2, 1, True),    # downsample / strided shortcut
        (2, 16, 16, 16, 16, 1, 2, False),  # identity shortcut, dilation > 1
    ]

    for idx, (N, Cin, H, W, Cout, stride, dilation, downsample) in enumerate(configs):
        kx, kp = jax.random.split(jax.random.fold_in(key, idx))
        x_nchw = jax.random.normal(kx, (N, Cin, H, W), jnp.float32)
        params = init_params(kp, Cin, Cout)

        out = bottleneck_forward(
            x_nchw, params, stride=stride, dilation=dilation,
            downsample=downsample)
        out = jax.block_until_ready(out)

        x_nhwc = jnp.transpose(x_nchw, (0, 2, 3, 1))
        ref = ref_bottleneck_nhwc(
            x_nhwc, params, stride=stride, dilation=dilation,
            downsample=downsample)
        ref = jnp.transpose(ref, (0, 3, 1, 2))
        assert out.shape == ref.shape, (out.shape, ref.shape)
        # bf16 MXU operands with f32 accumulation -> relaxed tolerance vs f32 ref.
        np.testing.assert_allclose(np.asarray(out), np.asarray(ref),
                                   rtol=3e-2, atol=3e-2)

    print("KERNEL_OK")
</pallas_src>

<mosaic_0001>
module attributes {stable_mosaic.version = 11 : i64} {
  func.func @_bottleneck_kernel(%arg0: i32, %arg1: i32, %arg2: memref<2x10x8x128xbf16, #tpu.memory_space<any>>, %arg3: memref<128x128xbf16, #tpu.memory_space<vmem>>, %arg4: memref<1x128xf32, #tpu.memory_space<vmem>>, %arg5: memref<3x384x128xbf16, #tpu.memory_space<vmem>>, %arg6: memref<1x128xf32, #tpu.memory_space<vmem>>, %arg7: memref<128x128xbf16, #tpu.memory_space<vmem>>, %arg8: memref<1x128xf32, #tpu.memory_space<vmem>>, %arg9: memref<128x128xbf16, #tpu.memory_space<vmem>>, %arg10: memref<1x128xf32, #tpu.memory_space<vmem>>, %arg11: memref<1x64x128xf32, #tpu.memory_space<vmem>>, %arg12: memref<2x10x8x128xbf16, #tpu.memory_space<vmem>>, %arg13: memref<80x384xbf16, #tpu.memory_space<vmem>>, %arg14: memref<2x!tpu.dma_semaphore, #tpu.memory_space<semaphore_mem>>) attributes {dimension_semantics = [#tpu.dimension_semantics<parallel>, #tpu.dimension_semantics<arbitrary>], iteration_bounds = array<i64: 2, 1>, scalar_prefetch = 0 : i64, scratch_operands = 3 : i64, tpu.core_type = #tpu.core_type<tc>, window_params = [{}, {pipeline_mode = #tpu.pipeline_mode<synchronous>, transform_indices = @transform_1, window_bounds = array<i64: 128, 128>}, {pipeline_mode = #tpu.pipeline_mode<synchronous>, transform_indices = @transform_2, window_bounds = array<i64: 1, 128>}, {pipeline_mode = #tpu.pipeline_mode<synchronous>, transform_indices = @transform_3, window_bounds = array<i64: 3, 384, 128>}, {pipeline_mode = #tpu.pipeline_mode<synchronous>, transform_indices = @transform_4, window_bounds = array<i64: 1, 128>}, {pipeline_mode = #tpu.pipeline_mode<synchronous>, transform_indices = @transform_5, window_bounds = array<i64: 128, 128>}, {pipeline_mode = #tpu.pipeline_mode<synchronous>, transform_indices = @transform_6, window_bounds = array<i64: 1, 128>}, {pipeline_mode = #tpu.pipeline_mode<synchronous>, transform_indices = @transform_7, window_bounds = array<i64: 128, 128>}, {pipeline_mode = #tpu.pipeline_mode<synchronous>, transform_indices = @transform_8, window_bounds = array<i64: 1, 128>}, {transform_indices = @transform_9, window_bounds = array<i64: 1, 64, 128>}]} {
    %c2_i32 = arith.constant 2 : i32
    %c0_i32 = arith.constant 0 : i32
    %0 = arith.cmpi eq, %c2_i32, %c0_i32 : i32
    %c1_i32 = arith.constant 1 : i32
    %1 = arith.select %0, %c1_i32, %c2_i32 : i32
    %2 = arith.remsi %arg1, %1 : i32
    %c0_i32_0 = arith.constant 0 : i32
    %3 = arith.cmpi ne, %2, %c0_i32_0 : i32
    %c0_i32_1 = arith.constant 0 : i32
    %4 = arith.cmpi slt, %2, %c0_i32_1 : i32
    %c0_i32_2 = arith.constant 0 : i32
    %5 = arith.cmpi slt, %1, %c0_i32_2 : i32
    %6 = arith.xori %4, %5 : i1
    %7 = arith.andi %6, %3 : i1
    %8 = arith.addi %2, %1 : i32
    %9 = arith.select %7, %8, %2 : i32
    %c0_i32_3 = arith.constant 0 : i32
    %10 = arith.cmpi eq, %arg1, %c0_i32_3 : i32
    %11 = arith.extui %10 : i1 to i32
    %c0_i32_4 = arith.constant 0 : i32
    %12 = arith.cmpi ne, %11, %c0_i32_4 : i32
    scf.if %12 {
      %c0_i32_61 = arith.constant 0 : i32
      %c0_i32_62 = arith.constant 0 : i32
      %c0_i32_63 = arith.constant 0 : i32
      %c0_i32_64 = arith.constant 0 : i32
      %c0_i32_65 = arith.constant 0 : i32
      %97 = tpu.memref_slice %arg2[%arg0, %c0_i32_63, %c0_i32_64, %c0_i32_65] : memref<2x10x8x128xbf16, #tpu.memory_space<any>> -> memref<1x10x8x128xbf16, #tpu.memory_space<any>>
      %98 = tpu.memref_squeeze %97 : memref<1x10x8x128xbf16, #tpu.memory_space<any>> -> memref<10x8x128xbf16, #tpu.memory_space<any>>
      %c0_i32_66 = arith.constant 0 : i32
      %c0_i32_67 = arith.constant 0 : i32
      %c0_i32_68 = arith.constant 0 : i32
      %99 = tpu.memref_slice %arg12[%c0_i32_61, %c0_i32_66, %c0_i32_67, %c0_i32_68] : memref<2x10x8x128xbf16, #tpu.memory_space<vmem>> -> memref<1x10x8x128xbf16, #tpu.memory_space<vmem>>
      %100 = tpu.memref_squeeze %99 : memref<1x10x8x128xbf16, #tpu.memory_space<vmem>> -> memref<10x8x128xbf16, #tpu.memory_space<vmem>>
      %101 = tpu.memref_slice %arg14[%c0_i32_62] : memref<2x!tpu.dma_semaphore, #tpu.memory_space<semaphore_mem>> -> memref<1x!tpu.dma_semaphore, #tpu.memory_space<semaphore_mem>>
      %102 = tpu.memref_squeeze %101 : memref<1x!tpu.dma_semaphore, #tpu.memory_space<semaphore_mem>> -> memref<!tpu.dma_semaphore, #tpu.memory_space<semaphore_mem>>
      tpu.enqueue_dma source(%98 : memref<10x8x128xbf16, #tpu.memory_space<any>>) target(%100 : memref<10x8x128xbf16, #tpu.memory_space<vmem>>) target_semaphore(%102 : memref<!tpu.dma_semaphore, #tpu.memory_space<semaphore_mem>>)
    } else {
    }
    %c0_i32_5 = arith.constant 0 : i32
    %c0_i32_6 = arith.constant 0 : i32
    %c0_i32_7 = arith.constant 0 : i32
    %c0_i32_8 = arith.constant 0 : i32
    %13 = tpu.memref_slice %arg2[%c0_i32_5, %c0_i32_6, %c0_i32_7, %c0_i32_8] : memref<2x10x8x128xbf16, #tpu.memory_space<any>> -> memref<1x10x8x128xbf16, #tpu.memory_space<any>>
    %14 = tpu.memref_squeeze %13 : memref<1x10x8x128xbf16, #tpu.memory_space<any>> -> memref<10x8x128xbf16, #tpu.memory_space<any>>
    %c0_i32_9 = arith.constant 0 : i32
    %c0_i32_10 = arith.constant 0 : i32
    %c0_i32_11 = arith.constant 0 : i32
    %15 = tpu.memref_slice %arg12[%9, %c0_i32_9, %c0_i32_10, %c0_i32_11] : memref<2x10x8x128xbf16, #tpu.memory_space<vmem>> -> memref<1x10x8x128xbf16, #tpu.memory_space<vmem>>
    %16 = tpu.memref_squeeze %15 : memref<1x10x8x128xbf16, #tpu.memory_space<vmem>> -> memref<10x8x128xbf16, #tpu.memory_space<vmem>>
    %17 = tpu.memref_slice %arg14[%9] : memref<2x!tpu.dma_semaphore, #tpu.memory_space<semaphore_mem>> -> memref<1x!tpu.dma_semaphore, #tpu.memory_space<semaphore_mem>>
    %18 = tpu.memref_squeeze %17 : memref<1x!tpu.dma_semaphore, #tpu.memory_space<semaphore_mem>> -> memref<!tpu.dma_semaphore, #tpu.memory_space<semaphore_mem>>
    tpu.wait_dma2 semaphore(%18 : memref<!tpu.dma_semaphore, #tpu.memory_space<semaphore_mem>>) src(%14 : memref<10x8x128xbf16, #tpu.memory_space<any>>) dst(%16 : memref<10x8x128xbf16, #tpu.memory_space<vmem>>)
    %c1_i32_12 = arith.constant 1 : i32
    %19 = arith.addi %arg1, %c1_i32_12 : i32
    %c1_i32_13 = arith.constant 1 : i32
    %20 = arith.cmpi slt, %19, %c1_i32_13 : i32
    %21 = arith.extui %20 : i1 to i32
    %c0_i32_14 = arith.constant 0 : i32
    %22 = arith.cmpi ne, %21, %c0_i32_14 : i32
    scf.if %22 {
      %c1_i32_61 = arith.constant 1 : i32
      %97 = arith.subi %c1_i32_61, %9 : i32
      %c1_i32_62 = arith.constant 1 : i32
      %98 = arith.addi %arg1, %c1_i32_62 : i32
      %c8_i32_63 = arith.constant 8 : i32
      %99 = arith.muli %98, %c8_i32_63 : i32
      %c0_i32_64 = arith.constant 0 : i32
      %c0_i32_65 = arith.constant 0 : i32
      %100 = tpu.memref_slice %arg2[%arg0, %99, %c0_i32_64, %c0_i32_65] : memref<2x10x8x128xbf16, #tpu.memory_space<any>> -> memref<1x10x8x128xbf16, #tpu.memory_space<any>>
      %101 = tpu.memref_squeeze %100 : memref<1x10x8x128xbf16, #tpu.memory_space<any>> -> memref<10x8x128xbf16, #tpu.memory_space<any>>
      %c0_i32_66 = arith.constant 0 : i32
      %c0_i32_67 = arith.constant 0 : i32
      %c0_i32_68 = arith.constant 0 : i32
      %102 = tpu.memref_slice %arg12[%97, %c0_i32_66, %c0_i32_67, %c0_i32_68] : memref<2x10x8x128xbf16, #tpu.memory_space<vmem>> -> memref<1x10x8x128xbf16, #tpu.memory_space<vmem>>
      %103 = tpu.memref_squeeze %102 : memref<1x10x8x128xbf16, #tpu.memory_space<vmem>> -> memref<10x8x128xbf16, #tpu.memory_space<vmem>>
      %104 = tpu.memref_slice %arg14[%97] : memref<2x!tpu.dma_semaphore, #tpu.memory_space<semaphore_mem>> -> memref<1x!tpu.dma_semaphore, #tpu.memory_space<semaphore_mem>>
      %105 = tpu.memref_squeeze %104 : memref<1x!tpu.dma_semaphore, #tpu.memory_space<semaphore_mem>> -> memref<!tpu.dma_semaphore, #tpu.memory_space<semaphore_mem>>
      tpu.enqueue_dma source(%101 : memref<10x8x128xbf16, #tpu.memory_space<any>>) target(%103 : memref<10x8x128xbf16, #tpu.memory_space<vmem>>) target_semaphore(%105 : memref<!tpu.dma_semaphore, #tpu.memory_space<semaphore_mem>>)
    } else {
    }
    %23 = arith.index_cast %9 : i32 to index
    %c0 = arith.constant 0 : index
    %c0_15 = arith.constant 0 : index
    %c0_16 = arith.constant 0 : index
    %24 = vector.load %arg12[%23, %c0, %c0_15, %c0_16] : memref<2x10x8x128xbf16, #tpu.memory_space<vmem>>, vector<1x10x8x128xbf16>
    %25 = vector.shape_cast %24 : vector<1x10x8x128xbf16> to vector<10x8x128xbf16>
    %26 = vector.shape_cast %25 : vector<10x8x128xbf16> to vector<80x128xbf16>
    %c0_17 = arith.constant 0 : index
    %c0_18 = arith.constant 0 : index
    %27 = vector.load %arg3[%c0_17, %c0_18] : memref<128x128xbf16, #tpu.memory_space<vmem>>, vector<128x128xbf16>
    %cst = arith.constant dense<0.000000e+00> : vector<80x128xf32>
    %28 = tpu.matmul %26, %27, %cst {dimension_numbers = #tpu.dot_dimension_numbers<[1], [0], [0], [1], [0, 0, 1, 1], [], []>} : vector<80x128xbf16>, vector<128x128xbf16>, vector<80x128xf32> -> vector<80x128xf32>
    %c0_19 = arith.constant 0 : index
    %c0_20 = arith.constant 0 : index
    %29 = vector.load %arg4[%c0_19, %c0_20] : memref<1x128xf32, #tpu.memory_space<vmem>>, vector<1x128xf32>
    %30 = vector.broadcast %29 : vector<1x128xf32> to vector<80x128xf32>
    %31 = arith.addf %28, %30 : vector<80x128xf32>
    %32 = vector.shape_cast %31 : vector<80x128xf32> to vector<10x8x128xf32>
    %33 = tpu.iota {dimensions = array<i32: 0>} : vector<10x1x1xi32>
    %c8_i32 = arith.constant 8 : i32
    %34 = arith.muli %arg1, %c8_i32 : i32
    %c1_i32_21 = arith.constant 1 : i32
    %35 = arith.subi %34, %c1_i32_21 : i32
    %36 = vector.broadcast %35 : i32 to vector<10x1x1xi32>
    %37 = arith.addi %33, %36 : vector<10x1x1xi32>
    %c0_i32_22 = arith.constant 0 : i32
    %38 = vector.broadcast %c0_i32_22 : i32 to vector<10x1x1xi32>
    %39 = arith.cmpi sge, %37, %38 : vector<10x1x1xi32>
    %c8_i32_23 = arith.constant 8 : i32
    %40 = vector.broadcast %c8_i32_23 : i32 to vector<10x1x1xi32>
    %41 = arith.cmpi slt, %37, %40 : vector<10x1x1xi32>
    %42 = arith.andi %39, %41 : vector<10x1x1xi1>
    %cst_24 = arith.constant 0.000000e+00 : f32
    %43 = vector.shape_cast %42 : vector<10x1x1xi1> to vector<10x1x1xi1>
    %44 = vector.broadcast %43 : vector<10x1x1xi1> to vector<10x8x128xi1>
    %45 = vector.broadcast %cst_24 : f32 to vector<10x8x128xf32>
    %46 = arith.select %44, %32, %45 : vector<10x8x128xi1>, vector<10x8x128xf32>
    %47 = arith.truncf %46 : vector<10x8x128xf32> to vector<10x8x128xbf16>
    %cst_25 = arith.constant 0.000000e+00 : bf16
    %48 = vector.broadcast %cst_25 : bf16 to vector<10x1x128xbf16>
    %49 = vector.extract_strided_slice %47 {offsets = [0, 0, 0], sizes = [10, 7, 128], strides = [1, 1, 1]} : vector<10x8x128xbf16> to vector<10x7x128xbf16>
    %50 = tpu.concatenate %48, %49 in 1 : vector<10x1x128xbf16>, vector<10x7x128xbf16> -> vector<10x8x128xbf16>
    %51 = vector.extract_strided_slice %47 {offsets = [0, 1, 0], sizes = [10, 7, 128], strides = [1, 1, 1]} : vector<10x8x128xbf16> to vector<10x7x128xbf16>
    %52 = tpu.concatenate %51, %48 in 1 : vector<10x7x128xbf16>, vector<10x1x128xbf16> -> vector<10x8x128xbf16>
    %53 = vector.shape_cast %50 : vector<10x8x128xbf16> to vector<80x128xbf16>
    %c0_26 = arith.constant 0 : index
    %c0_27 = arith.constant 0 : index
    %54 = vector.load %arg13[%c0_26, %c0_27] : memref<80x384xbf16, #tpu.memory_space<vmem>>, vector<80x128xbf16>
    tpu.vector_store %arg13[%c0_26, %c0_27], %53 {strides = array<i32>} : memref<80x384xbf16, #tpu.memory_space<vmem>>, vector<80x128xbf16>,
    %55 = vector.shape_cast %47 : vector<10x8x128xbf16> to vector<80x128xbf16>
    %c0_28 = arith.constant 0 : index
    %c128 = arith.constant 128 : index
    %56 = vector.load %arg13[%c0_28, %c128] : memref<80x384xbf16, #tpu.memory_space<vmem>>, vector<80x128xbf16>
    tpu.vector_store %arg13[%c0_28, %c128], %55 {strides = array<i32>} : memref<80x384xbf16, #tpu.memory_space<vmem>>, vector<80x128xbf16>,
    %57 = vector.shape_cast %52 : vector<10x8x128xbf16> to vector<80x128xbf16>
    %c0_29 = arith.constant 0 : index
    %c256 = arith.constant 256 : index
    %58 = vector.load %arg13[%c0_29, %c256] : memref<80x384xbf16, #tpu.memory_space<vmem>>, vector<80x128xbf16>
    tpu.vector_store %arg13[%c0_29, %c256], %57 {strides = array<i32>} : memref<80x384xbf16, #tpu.memory_space<vmem>>, vector<80x128xbf16>,
    %cst_30 = arith.constant 0.000000e+00 : f32
    %59 = vector.broadcast %cst_30 : f32 to vector<64x128xf32>
    %c0_31 = arith.constant 0 : index
    %c0_32 = arith.constant 0 : index
    %60 = vector.load %arg13[%c0_31, %c0_32] : memref<80x384xbf16, #tpu.memory_space<vmem>>, vector<64x384xbf16>
    %c0_33 = arith.constant 0 : index
    %c0_34 = arith.constant 0 : index
    %c0_35 = arith.constant 0 : index
    %61 = vector.load %arg5[%c0_33, %c0_34, %c0_35] : memref<3x384x128xbf16, #tpu.memory_space<vmem>>, vector<1x384x128xbf16>
    %62 = vector.shape_cast %61 : vector<1x384x128xbf16> to vector<384x128xbf16>
    %cst_36 = arith.constant dense<0.000000e+00> : vector<64x128xf32>
    %63 = tpu.matmul %60, %62, %cst_36 {dimension_numbers = #tpu.dot_dimension_numbers<[1], [0], [0], [1], [0, 0, 1, 1], [], []>} : vector<64x384xbf16>, vector<384x128xbf16>, vector<64x128xf32> -> vector<64x128xf32>
    %64 = arith.addf %59, %63 : vector<64x128xf32>
    %c8 = arith.constant 8 : index
    %c0_37 = arith.constant 0 : index
    %65 = vector.load %arg13[%c8, %c0_37] : memref<80x384xbf16, #tpu.memory_space<vmem>>, vector<64x384xbf16>
    %c1 = arith.constant 1 : index
    %c0_38 = arith.constant 0 : index
    %c0_39 = arith.constant 0 : index
    %66 = vector.load %arg5[%c1, %c0_38, %c0_39] : memref<3x384x128xbf16, #tpu.memory_space<vmem>>, vector<1x384x128xbf16>
    %67 = vector.shape_cast %66 : vector<1x384x128xbf16> to vector<384x128xbf16>
    %cst_40 = arith.constant dense<0.000000e+00> : vector<64x128xf32>
    %68 = tpu.matmul %65, %67, %cst_40 {dimension_numbers = #tpu.dot_dimension_numbers<[1], [0], [0], [1], [0, 0, 1, 1], [], []>} : vector<64x384xbf16>, vector<384x128xbf16>, vector<64x128xf32> -> vector<64x128xf32>
    %69 = arith.addf %64, %68 : vector<64x128xf32>
    %c16 = arith.constant 16 : index
    %c0_41 = arith.constant 0 : index
    %70 = vector.load %arg13[%c16, %c0_41] : memref<80x384xbf16, #tpu.memory_space<vmem>>, vector<64x384xbf16>
    %c2 = arith.constant 2 : index
    %c0_42 = arith.constant 0 : index
    %c0_43 = arith.constant 0 : index
    %71 = vector.load %arg5[%c2, %c0_42, %c0_43] : memref<3x384x128xbf16, #tpu.memory_space<vmem>>, vector<1x384x128xbf16>
    %72 = vector.shape_cast %71 : vector<1x384x128xbf16> to vector<384x128xbf16>
    %cst_44 = arith.constant dense<0.000000e+00> : vector<64x128xf32>
    %73 = tpu.matmul %70, %72, %cst_44 {dimension_numbers = #tpu.dot_dimension_numbers<[1], [0], [0], [1], [0, 0, 1, 1], [], []>} : vector<64x384xbf16>, vector<384x128xbf16>, vector<64x128xf32> -> vector<64x128xf32>
    %74 = arith.addf %69, %73 : vector<64x128xf32>
    %c0_45 = arith.constant 0 : index
    %c0_46 = arith.constant 0 : index
    %75 = vector.load %arg6[%c0_45, %c0_46] : memref<1x128xf32, #tpu.memory_space<vmem>>, vector<1x128xf32>
    %76 = vector.broadcast %75 : vector<1x128xf32> to vector<64x128xf32>
    %77 = arith.addf %74, %76 : vector<64x128xf32>
    %78 = arith.truncf %77 : vector<64x128xf32> to vector<64x128xbf16>
    %c0_47 = arith.constant 0 : index
    %c0_48 = arith.constant 0 : index
    %79 = vector.load %arg7[%c0_47, %c0_48] : memref<128x128xbf16, #tpu.memory_space<vmem>>, vector<128x128xbf16>
    %cst_49 = arith.constant dense<0.000000e+00> : vector<64x128xf32>
    %80 = tpu.matmul %78, %79, %cst_49 {dimension_numbers = #tpu.dot_dimension_numbers<[1], [0], [0], [1], [0, 0, 1, 1], [], []>} : vector<64x128xbf16>, vector<128x128xbf16>, vector<64x128xf32> -> vector<64x128xf32>
    %c0_50 = arith.constant 0 : index
    %c0_51 = arith.constant 0 : index
    %81 = vector.load %arg8[%c0_50, %c0_51] : memref<1x128xf32, #tpu.memory_space<vmem>>, vector<1x128xf32>
    %82 = vector.broadcast %81 : vector<1x128xf32> to vector<64x128xf32>
    %83 = arith.addf %80, %82 : vector<64x128xf32>
    %84 = vector.extract_strided_slice %25 {offsets = [1, 0, 0], sizes = [8, 8, 128], strides = [1, 1, 1]} : vector<10x8x128xbf16> to vector<8x8x128xbf16>
    %85 = vector.shape_cast %84 : vector<8x8x128xbf16> to vector<64x128xbf16>
    %c0_52 = arith.constant 0 : index
    %c0_53 = arith.constant 0 : index
    %86 = vector.load %arg9[%c0_52, %c0_53] : memref<128x128xbf16, #tpu.memory_space<vmem>>, vector<128x128xbf16>
    %cst_54 = arith.constant dense<0.000000e+00> : vector<64x128xf32>
    %87 = tpu.matmul %85, %86, %cst_54 {dimension_numbers = #tpu.dot_dimension_numbers<[1], [0], [0], [1], [0, 0, 1, 1], [], []>} : vector<64x128xbf16>, vector<128x128xbf16>, vector<64x128xf32> -> vector<64x128xf32>
    %c0_55 = arith.constant 0 : index
    %c0_56 = arith.constant 0 : index
    %88 = vector.load %arg10[%c0_55, %c0_56] : memref<1x128xf32, #tpu.memory_space<vmem>>, vector<1x128xf32>
    %89 = vector.broadcast %88 : vector<1x128xf32> to vector<64x128xf32>
    %90 = arith.addf %87, %89 : vector<64x128xf32>
    %91 = arith.addf %83, %90 : vector<64x128xf32>
    %cst_57 = arith.constant 0.000000e+00 : f32
    %92 = vector.broadcast %cst_57 : f32 to vector<64x128xf32>
    %93 = arith.maximumf %91, %92 : vector<64x128xf32>
    %c0_58 = arith.constant 0 : index
    %c0_59 = arith.constant 0 : index
    %c0_60 = arith.constant 0 : index
    %94 = vector.load %arg11[%c0_58, %c0_59, %c0_60] : memref<1x64x128xf32, #tpu.memory_space<vmem>>, vector<1x64x128xf32>
    %95 = vector.shape_cast %94 : vector<1x64x128xf32> to vector<64x128xf32>
    %96 = vector.shape_cast %93 : vector<64x128xf32> to vector<1x64x128xf32>
    tpu.vector_store %arg11[%c0_58, %c0_59, %c0_60], %96 {strides = array<i32>} : memref<1x64x128xf32, #tpu.memory_space<vmem>>, vector<1x64x128xf32>,
    return
  }
  func.func @transform_1(%arg0: i32, %arg1: i32) -> (i32, i32) {
    %c0_i32 = arith.constant 0 : i32
    %c0_i32_0 = arith.constant 0 : i32
    %c0_i32_1 = arith.constant 0 : i32
    return %c0_i32, %c0_i32_0 : i32, i32
  }
  func.func @transform_2(%arg0: i32, %arg1: i32) -> (i32, i32) {
    %c0_i32 = arith.constant 0 : i32
    %c0_i32_0 = arith.constant 0 : i32
    %c0_i32_1 = arith.constant 0 : i32
    return %c0_i32, %c0_i32_0 : i32, i32
  }
  func.func @transform_3(%arg0: i32, %arg1: i32) -> (i32, i32, i32) {
    %c0_i32 = arith.constant 0 : i32
    %c0_i32_0 = arith.constant 0 : i32
    %c0_i32_1 = arith.constant 0 : i32
    %c0_i32_2 = arith.constant 0 : i32
    return %c0_i32, %c0_i32_0, %c0_i32_1 : i32, i32, i32
  }
  func.func @transform_4(%arg0: i32, %arg1: i32) -> (i32, i32) {
    %c0_i32 = arith.constant 0 : i32
    %c0_i32_0 = arith.constant 0 : i32
    %c0_i32_1 = arith.constant 0 : i32
    return %c0_i32, %c0_i32_0 : i32, i32
  }
  func.func @transform_5(%arg0: i32, %arg1: i32) -> (i32, i32) {
    %c0_i32 = arith.constant 0 : i32
    %c0_i32_0 = arith.constant 0 : i32
    %c0_i32_1 = arith.constant 0 : i32
    return %c0_i32, %c0_i32_0 : i32, i32
  }
  func.func @transform_6(%arg0: i32, %arg1: i32) -> (i32, i32) {
    %c0_i32 = arith.constant 0 : i32
    %c0_i32_0 = arith.constant 0 : i32
    %c0_i32_1 = arith.constant 0 : i32
    return %c0_i32, %c0_i32_0 : i32, i32
  }
  func.func @transform_7(%arg0: i32, %arg1: i32) -> (i32, i32) {
    %c0_i32 = arith.constant 0 : i32
    %c0_i32_0 = arith.constant 0 : i32
    %c0_i32_1 = arith.constant 0 : i32
    return %c0_i32, %c0_i32_0 : i32, i32
  }
  func.func @transform_8(%arg0: i32, %arg1: i32) -> (i32, i32) {
    %c0_i32 = arith.constant 0 : i32
    %c0_i32_0 = arith.constant 0 : i32
    %c0_i32_1 = arith.constant 0 : i32
    return %c0_i32, %c0_i32_0 : i32, i32
  }
  func.func @transform_9(%arg0: i32, %arg1: i32) -> (i32, i32, i32) {
    %c0_i32 = arith.constant 0 : i32
    %c0_i32_0 = arith.constant 0 : i32
    return %arg0, %arg1, %c0_i32 : i32, i32, i32
  }
}

</mosaic_0001>

<llo_original>
// kernel: tpu_custom_call.1
$region0: #{tpu_custom_call.1}
  #allocation0 [shape = 'u32[]', space=smem, size = 0x4, offset = 0x4, fixed_abs, tag = 'smem constant byte address 0x4 - core index']
  #allocation1 [shape = 'u32[72,128]{1,0:T(1,128)}', space=vmem, size = 0x9000, scoped, tag = 'internal scratch']
  #allocation2 [shape = 'bf16[2,10,8,128]{3,2,1,0:T(8,128)(2,1)}', space=vmem, size = 0xa000, scoped, tag = 'scratch operand']
  #allocation3 [shape = 'bf16[80,384]{1,0:T(8,128)(2,1)}', space=vmem, size = 0xf000, scoped, tag = 'scratch operand']
  #allocation4 [shape = 's32[2]{0}', space=sflag, size = 0x8, scoped, tag = 'scratch operand']
  #allocation14 [shape = 's32[]', space=sflag, size = 0x4, offset = 0, fixed_abs, tag = 'sflag constant byte address 0x0 - dummy sync flag']
  #allocation15 [shape = 's32[]', space=sflag, size = 0x4, offset = 0, fixed_abs, tag = 'sflag constant byte address 0x0 - dummy sync flag']
  #allocation16 [shape = 'u32[]', space=smem, size = 0x4, offset = 0x44, fixed_abs, tag = 'smem constant byte address 0x44 - assertion arg 0']
  #allocation17 [shape = 'u32[]', space=smem, size = 0x4, offset = 0x48, fixed_abs, tag = 'smem constant byte address 0x48 - assertion arg 1']
  #allocation18 [shape = 's32[]', space=sflag, size = 0x4, offset = 0, fixed_abs, tag = 'sflag constant byte address 0x0 - dummy sync flag']
  #allocation19 [shape = 's32[]', space=sflag, size = 0x4, offset = 0, fixed_abs, tag = 'sflag constant byte address 0x0 - dummy sync flag']
  %s0 = inlined_call_operand.hbm [shape: bf16[2,10,8,128], index: 0, kind: input, shape index: {}]
  %s1 = inlined_call_operand.hbm [shape: bf16[128,128], index: 1, kind: input, shape index: {}]
  %s2 = inlined_call_operand.vmem [shape: f32[1,128], index: 2, kind: input, shape index: {}]
  %s3 = inlined_call_operand.hbm [shape: bf16[3,384,128], index: 3, kind: input, shape index: {}]
  %s4 = inlined_call_operand.vmem [shape: f32[1,128], index: 4, kind: input, shape index: {}]
  %s5 = inlined_call_operand.hbm [shape: bf16[128,128], index: 5, kind: input, shape index: {}]
  %s6 = inlined_call_operand.vmem [shape: f32[1,128], index: 6, kind: input, shape index: {}]
  %s7 = inlined_call_operand.hbm [shape: bf16[128,128], index: 7, kind: input, shape index: {}]
  %s8 = inlined_call_operand.vmem [shape: f32[1,128], index: 8, kind: input, shape index: {}]
  %s9 = inlined_call_operand.hbm [shape: f32[2,64,128], index: 9, kind: output, shape index: {}]
  %s10 = sld [smem:[#allocation0]]
  $region97: #{tpu_custom_call.1} parent=0
    _
  %s12 = ssub.s32 1, %s10
  %s13 = scalar_select 0, %s12, %s10
  $region1: #{tpu_custom_call.1} parent=0
    #allocation5 [shape = 'u8[32768]{0}', space=vmem, size = 0x8000, scoped, tag = 'input window, operand 1, single buffered']
    #allocation6 [shape = 's32[2]{0}', space=sflag, size = 0x8, scoped, tag = 'scoped memory for tpu_custom_call.1']
    #allocation7 [shape = 's32[2]{0}', space=sflag, size = 0x8, scoped, tag = 'scoped memory for tpu_custom_call.1']
    #allocation8 [shape = 'u8[294912]{0}', space=vmem, size = 0x48000, scoped, tag = 'input window, operand 3, single buffered']
    #allocation9 [shape = 's32[1]{0}', space=sflag, size = 0x4, scoped, tag = 'scoped memory for tpu_custom_call.1']
    #allocation10 [shape = 'u8[32768]{0}', space=vmem, size = 0x8000, scoped, tag = 'input window, operand 5, single buffered']
    #allocation11 [shape = 'u8[32768]{0}', space=vmem, size = 0x8000, scoped, tag = 'input window, operand 7, single buffered']
    #allocation12 [shape = 's32[1]{0}', space=sflag, size = 0x4, scoped, tag = 'scoped memory for tpu_custom_call.1']
    #allocation13 [shape = 'u8[65536]{0}', space=vmem, size = 0x10000, scoped, tag = 'output window, operand 0']
    %14 = vsyncpa [#allocation6], 0
    %15 = vsyncpa [#allocation9], 0
    %16 = vsyncpa [#allocation12], 0
    %17 = vsyncpa [#allocation7], 0
    %s18 = scalar_lea.sflag [#allocation7], 1
    %19 = vsyncpa %s18, 0
    loop: start=0, step=1, limit=4
    $region2: #{tpu_custom_call.1} parent=1 // loop_pre_header
      _
    $region3: #{tpu_custom_call.1} parent=1 // loop_header
      %s21 = sphi 0, %s25
      %p22 = scmp.ge.s32.totalorder %s21, 4
      %s28 = sphi 0, %s40
      %s29 = sphi 0, %s36
      %s30 = sphi 0, %s28
      %s31 = sphi 0, %s29
      %s32 = sphi 0, %s30
      %s33 = sphi 0, %s31
      %s41 = sphi 0, %s41
      %s43 = sphi 0, %s41
      %s44 = sphi 0, %s43
      %s58 = sphi 0, %s44
      %s62 = sphi 0, %s62
      %s64 = sphi 0, %s62
      %s65 = sphi 0, %s64
      %s79 = sphi 0, %s65
      %s83 = sphi 0, %s83
      %s85 = sphi 0, %s83
      %s86 = sphi 0, %s85
      %s100 = sphi 0, %s86
      %s104 = sphi 0, %s104
      %s106 = sphi 0, %s104
      %s107 = sphi 0, %s106
      %s121 = sphi 0, %s107
      %s125 = sphi 0, %s125
      %s127 = sphi 0, %s125
      %s128 = sphi 0, %s127
      %s142 = sphi 0, %s128
      %s146 = sphi 0, %s146
      %s148 = sphi 0, %s146
      %s149 = sphi 0, %s148
      %s163 = sphi 0, %s149
      %s167 = sphi 0, %s167
      %s169 = sphi 0, %s167
      %s170 = sphi 0, %s169
      %s184 = sphi 0, %s170
      %s188 = sphi 0, %s188
      %s190 = sphi 0, %s188
      %s191 = sphi 0, %s190
      %s205 = sphi 0, %s191
      %s213 = sphi 0, %s215
      %s216 = sphi 0, %s213
      %s217 = sphi 0, %s216
      %s233 = sphi 0, %s217
    $region4: #{tpu_custom_call.1} parent=1 // loop_header_branch
      %24 = sbr.rel (%p22) target = $region8
    $region5: #{tpu_custom_call.1} parent=1 // loop_body
      %s26 = ssub.s32 %s21, 1
      %s27 = ssub.s32 %s21, 2
      %s34 = sadd.s32 1, %s29
      %p35 = scmp.ge.s32.totalorder %s34, 1
      %s36 = scalar_select %p35, 0, %s34
      %s37 = sadd.s32 1, %s28
      %s38 = scalar_select %p35, %s37, %s28
      %p39 = scmp.ge.s32.totalorder %s38, 2
      %s40 = scalar_select %p39, 0, %s38
      %s42 = sadd.s32 %s41, 1
      %p45 = scmp.eq.s32.totalorder %s21, 1
      %p46 = scmp.ne.s32.totalorder %s41, %s43
      %p47 = scmp.eq.s32.totalorder %s21, 0
      %p48 = por %p46, %p47
      %p49 = scmp.ne.s32.totalorder %s41, %s43
      %p50 = scmp.eq.s32.totalorder %s26, 1
      %p51 = por %p49, %p50
      %p52 = scmp.ne.s32.totalorder %s43, %s44
      %p53 = scmp.eq.s32.totalorder %s26, 0
      %p54 = por %p52, %p53
      %p55 = scmp.ne.s32.totalorder %s43, %s44
      %p56 = scmp.eq.s32.totalorder %s27, 1
      %p57 = por %p55, %p56
      %p59 = scmp.ne.s32.totalorder %s44, %s58
      %p60 = scmp.eq.s32.totalorder %s27, 0
      %p61 = por %p59, %p60
      %s63 = sadd.s32 %s62, 1
      %p66 = scmp.eq.s32.totalorder %s21, 1
      %p67 = scmp.ne.s32.totalorder %s62, %s64
      %p68 = scmp.eq.s32.totalorder %s21, 0
      %p69 = por %p67, %p68
      %p70 = scmp.ne.s32.totalorder %s62, %s64
      %p71 = scmp.eq.s32.totalorder %s26, 1
      %p72 = por %p70, %p71
      %p73 = scmp.ne.s32.totalorder %s64, %s65
      %p74 = scmp.eq.s32.totalorder %s26, 0
      %p75 = por %p73, %p74
      %p76 = scmp.ne.s32.totalorder %s64, %s65
      %p77 = scmp.eq.s32.totalorder %s27, 1
      %p78 = por %p76, %p77
      %p80 = scmp.ne.s32.totalorder %s65, %s79
      %p81 = scmp.eq.s32.totalorder %s27, 0
      %p82 = por %p80, %p81
      %s84 = sadd.s32 %s83, 1
      %p87 = scmp.eq.s32.totalorder %s21, 1
      %p88 = scmp.ne.s32.totalorder %s83, %s85
      %p89 = scmp.eq.s32.totalorder %s21, 0
      %p90 = por %p88, %p89
      %p91 = scmp.ne.s32.totalorder %s83, %s85
      %p92 = scmp.eq.s32.totalorder %s26, 1
      %p93 = por %p91, %p92
      %p94 = scmp.ne.s32.totalorder %s85, %s86
      %p95 = scmp.eq.s32.totalorder %s26, 0
      %p96 = por %p94, %p95
      %p97 = scmp.ne.s32.totalorder %s85, %s86
      %p98 = scmp.eq.s32.totalorder %s27, 1
      %p99 = por %p97, %p98
      %p101 = scmp.ne.s32.totalorder %s86, %s100
      %p102 = scmp.eq.s32.totalorder %s27, 0
      %p103 = por %p101, %p102
      %s105 = sadd.s32 %s104, 1
      %p108 = scmp.eq.s32.totalorder %s21, 1
      %p109 = scmp.ne.s32.totalorder %s104, %s106
      %p110 = scmp.eq.s32.totalorder %s21, 0
      %p111 = por %p109, %p110
      %p112 = scmp.ne.s32.totalorder %s104, %s106
      %p113 = scmp.eq.s32.totalorder %s26, 1
      %p114 = por %p112, %p113
      %p115 = scmp.ne.s32.totalorder %s106, %s107
      %p116 = scmp.eq.s32.totalorder %s26, 0
      %p117 = por %p115, %p116
      %p118 = scmp.ne.s32.totalorder %s106, %s107
      %p119 = scmp.eq.s32.totalorder %s27, 1
      %p120 = por %p118, %p119
      %p122 = scmp.ne.s32.totalorder %s107, %s121
      %p123 = scmp.eq.s32.totalorder %s27, 0
      %p124 = por %p122, %p123
      %s126 = sadd.s32 %s125, 1
      %p129 = scmp.eq.s32.totalorder %s21, 1
      %p130 = scmp.ne.s32.totalorder %s125, %s127
      %p131 = scmp.eq.s32.totalorder %s21, 0
      %p132 = por %p130, %p131
      %p133 = scmp.ne.s32.totalorder %s125, %s127
      %p134 = scmp.eq.s32.totalorder %s26, 1
      %p135 = por %p133, %p134
      %p136 = scmp.ne.s32.totalorder %s127, %s128
      %p137 = scmp.eq.s32.totalorder %s26, 0
      %p138 = por %p136, %p137
      %p139 = scmp.ne.s32.totalorder %s127, %s128
      %p140 = scmp.eq.s32.totalorder %s27, 1
      %p141 = por %p139, %p140
      %p143 = scmp.ne.s32.totalorder %s128, %s142
      %p144 = scmp.eq.s32.totalorder %s27, 0
      %p145 = por %p143, %p144
      %s147 = sadd.s32 %s146, 1
      %p150 = scmp.eq.s32.totalorder %s21, 1
      %p151 = scmp.ne.s32.totalorder %s146, %s148
      %p152 = scmp.eq.s32.totalorder %s21, 0
      %p153 = por %p151, %p152
      %p154 = scmp.ne.s32.totalorder %s146, %s148
      %p155 = scmp.eq.s32.totalorder %s26, 1
      %p156 = por %p154, %p155
      %p157 = scmp.ne.s32.totalorder %s148, %s149
      %p158 = scmp.eq.s32.totalorder %s26, 0
      %p159 = por %p157, %p158
      %p160 = scmp.ne.s32.totalorder %s148, %s149
      %p161 = scmp.eq.s32.totalorder %s27, 1
      %p162 = por %p160, %p161
      %p164 = scmp.ne.s32.totalorder %s149, %s163
      %p165 = scmp.eq.s32.totalorder %s27, 0
      %p166 = por %p164, %p165
      %s168 = sadd.s32 %s167, 1
      %p171 = scmp.eq.s32.totalorder %s21, 1
      %p172 = scmp.ne.s32.totalorder %s167, %s169
      %p173 = scmp.eq.s32.totalorder %s21, 0
      %p174 = por %p172, %p173
      %p175 = scmp.ne.s32.totalorder %s167, %s169
      %p176 = scmp.eq.s32.totalorder %s26, 1
      %p177 = por %p175, %p176
      %p178 = scmp.ne.s32.totalorder %s169, %s170
      %p179 = scmp.eq.s32.totalorder %s26, 0
      %p180 = por %p178, %p179
      %p181 = scmp.ne.s32.totalorder %s169, %s170
      %p182 = scmp.eq.s32.totalorder %s27, 1
      %p183 = por %p181, %p182
      %p185 = scmp.ne.s32.totalorder %s170, %s184
      %p186 = scmp.eq.s32.totalorder %s27, 0
      %p187 = por %p185, %p186
      %s189 = sadd.s32 %s188, 1
      %p192 = scmp.eq.s32.totalorder %s21, 1
      %p193 = scmp.ne.s32.totalorder %s188, %s190
      %p194 = scmp.eq.s32.totalorder %s21, 0
      %p195 = por %p193, %p194
      %p196 = scmp.ne.s32.totalorder %s188, %s190
      %p197 = scmp.eq.s32.totalorder %s26, 1
      %p198 = por %p196, %p197
      %p199 = scmp.ne.s32.totalorder %s190, %s191
      %p200 = scmp.eq.s32.totalorder %s26, 0
      %p201 = por %p199, %p200
      %p202 = scmp.ne.s32.totalorder %s190, %s191
      %p203 = scmp.eq.s32.totalorder %s27, 1
      %p204 = por %p202, %p203
      %p206 = scmp.ne.s32.totalorder %s191, %s205
      %p207 = scmp.eq.s32.totalorder %s27, 0
      %p208 = por %p206, %p207
      %s209 = ssub.s32 %s28, %s40
      %s210 = ssub.s32 %s29, %s36
      %s211 = sor.u32 %s209, %s210
      %p212 = scmp.eq.s32.totalorder %s211, 0
      %s214 = sadd.s32 %s213, 1
      %s215 = scalar_select %p212, %s213, %s214
      %p218 = pneg %p212
      %p219 = scmp.eq.s32.totalorder %s21, 1
      %p220 = por %p218, %p219
      %p221 = scmp.ne.s32.totalorder %s213, %s216
      %p222 = scmp.eq.s32.totalorder %s21, 0
      %p223 = por %p221, %p222
      %p224 = scmp.ne.s32.totalorder %s213, %s216
      %p225 = scmp.eq.s32.totalorder %s26, 1
      %p226 = por %p224, %p225
      %p227 = scmp.ne.s32.totalorder %s216, %s217
      %p228 = scmp.eq.s32.totalorder %s26, 0
      %p229 = por %p227, %p228
      %p230 = scmp.ne.s32.totalorder %s216, %s217
      %p231 = scmp.eq.s32.totalorder %s27, 1
      %p232 = por %p230, %p231
      %p234 = scmp.ne.s32.totalorder %s217, %s233
      %p235 = scmp.eq.s32.totalorder %s27, 0
      %p236 = por %p234, %p235
      %p237 = scmp.le.s32.totalorder 1, %s21
      %p238 = scmp.lt.s32.totalorder %s21, 3
      %p239 = pnand %p237, %p238
      %p240 = pneg %p239
      // Predicated region
      $region9: #{tpu_custom_call.1} parent=5 // pred_check
        _
      $region10: #{tpu_custom_call.1} parent=5 // pred_check_branch
        %242 = sbr.rel (%p239) target = $region12
      $region11: #{tpu_custom_call.1} parent=5 // pred_region
        %s243 = ssub.s32 %s21, 1
        // Predicated region
        $region13: #{tpu_custom_call.1} parent=11 // pred_check
          %p244 = pneg %p54
        $region14: #{tpu_custom_call.1} parent=11 // pred_check_branch
          %246 = sbr.rel (%p244) target = $region16
        $region15: #{tpu_custom_call.1} parent=11 // pred_region
          %248 = vsyncadd [#allocation6], 0
          %s249 = sshll.u32 %s1, 4
          %s250 = int_to_ptr.hbm [resolvable:$true] %s249
          %s251 = sshll.u32 [#allocation5], 4
          %s252 = int_to_ptr.vmem [resolvable:$true] %s251
          %257 = dma.hbm_to_vmem [thread:$0]  %s250, 1024, %s252, [#allocation6], 64, 64, 4
        $region16: #{tpu_custom_call.1} parent=11 // pred_fallthru
          _
        // Predicated region
        $region17: #{tpu_custom_call.1} parent=11 // pred_check
          %p258 = pneg %p75
        $region18: #{tpu_custom_call.1} parent=11 // pred_check_branch
          %260 = sbr.rel (%p258) target = $region20
        $region19: #{tpu_custom_call.1} parent=11 // pred_region
          _
        $region20: #{tpu_custom_call.1} parent=11 // pred_fallthru
          _
        // Predicated region
        $region21: #{tpu_custom_call.1} parent=11 // pred_check
          %p261 = pneg %p96
        $region22: #{tpu_custom_call.1} parent=11 // pred_check_branch
          %263 = sbr.rel (%p261) target = $region24
        $region23: #{tpu_custom_call.1} parent=11 // pred_region
          %265 = vsyncadd [#allocation9], 0
          %s266 = sshll.u32 %s3, 4
          %s267 = int_to_ptr.hbm [resolvable:$true] %s266
          %s268 = sshll.u32 [#allocation8], 4
          %s269 = int_to_ptr.vmem [resolvable:$true] %s268
          %274 = dma.hbm_to_vmem [thread:$0]  %s267, 9216, %s269, [#allocation9], 64, 64, 4
        $region24: #{tpu_custom_call.1} parent=11 // pred_fallthru
          _
        // Predicated region
        $region25: #{tpu_custom_call.1} parent=11 // pred_check
          %p275 = pneg %p117
        $region26: #{tpu_custom_call.1} parent=11 // pred_check_branch
          %277 = sbr.rel (%p275) target = $region28
        $region27: #{tpu_custom_call.1} parent=11 // pred_region
          _
        $region28: #{tpu_custom_call.1} parent=11 // pred_fallthru
          _
        // Predicated region
        $region29: #{tpu_custom_call.1} parent=11 // pred_check
          %p278 = pneg %p138
        $region30: #{tpu_custom_call.1} parent=11 // pred_check_branch
          %280 = sbr.rel (%p278) target = $region32
        $region31: #{tpu_custom_call.1} parent=11 // pred_region
          %282 = vsyncadd [#allocation9], 0
          %s283 = sshll.u32 %s5, 4
          %s284 = int_to_ptr.hbm [resolvable:$true] %s283
          %s285 = sshll.u32 [#allocation10], 4
          %s286 = int_to_ptr.vmem [resolvable:$true] %s285
          %291 = dma.hbm_to_vmem [thread:$0]  %s284, 1024, %s286, [#allocation9], 64, 64, 4
        $region32: #{tpu_custom_call.1} parent=11 // pred_fallthru
          _
        // Predicated region
        $region33: #{tpu_custom_call.1} parent=11 // pred_check
          %p292 = pneg %p159
        $region34: #{tpu_custom_call.1} parent=11 // pred_check_branch
          %294 = sbr.rel (%p292) target = $region36
        $region35: #{tpu_custom_call.1} parent=11 // pred_region
          _
        $region36: #{tpu_custom_call.1} parent=11 // pred_fallthru
          _
        // Predicated region
        $region37: #{tpu_custom_call.1} parent=11 // pred_check
          %p295 = pneg %p180
        $region38: #{tpu_custom_call.1} parent=11 // pred_check_branch
          %297 = sbr.rel (%p295) target = $region40
        $region39: #{tpu_custom_call.1} parent=11 // pred_region
          %299 = vsyncadd [#allocation12], 0
          %s300 = sshll.u32 %s7, 4
          %s301 = int_to_ptr.hbm [resolvable:$true] %s300
          %s302 = sshll.u32 [#allocation11], 4
          %s303 = int_to_ptr.vmem [resolvable:$true] %s302
          %308 = dma.hbm_to_vmem [thread:$0]  %s301, 1024, %s303, [#allocation12], 64, 64, 4
        $region40: #{tpu_custom_call.1} parent=11 // pred_fallthru
          _
        // Predicated region
        $region41: #{tpu_custom_call.1} parent=11 // pred_check
          %p309 = pneg %p201
        $region42: #{tpu_custom_call.1} parent=11 // pred_check_branch
          %311 = sbr.rel (%p309) target = $region44
        $region43: #{tpu_custom_call.1} parent=11 // pred_region
          _
        $region44: #{tpu_custom_call.1} parent=11 // pred_fallthru
          _
      $region12: #{tpu_custom_call.1} parent=5 // pred_fallthru
        _
      %p312 = scmp.lt.s32.totalorder %s21, 2
      // Predicated region
      $region45: #{tpu_custom_call.1} parent=5 // pred_check
        %p313 = pneg %p312
      $region46: #{tpu_custom_call.1} parent=5 // pred_check_branch
        %315 = sbr.rel (%p313) target = $region48
      $region47: #{tpu_custom_call.1} parent=5 // pred_region
        _
      $region48: #{tpu_custom_call.1} parent=5 // pred_fallthru
        _
      %p316 = scmp.le.s32.totalorder 1, %s21
      %p317 = scmp.lt.s32.totalorder %s21, 3
      %p318 = pnand %p316, %p317
      %p319 = pneg %p318
      // Predicated region
      $region49: #{tpu_custom_call.1} parent=5 // pred_check
        _
      $region50: #{tpu_custom_call.1} parent=5 // pred_check_branch
        %321 = sbr.rel (%p318) target = $region52
      $region51: #{tpu_custom_call.1} parent=5 // pred_region
        %s322 = ssub.s32 %s21, 1
        // Predicated region
        $region53: #{tpu_custom_call.1} parent=51 // pred_check
          %p323 = pneg %p54
        $region54: #{tpu_custom_call.1} parent=51 // pred_check_branch
          %325 = sbr.rel (%p323) target = $region56
        $region55: #{tpu_custom_call.1} parent=51 // pred_region
          %327 = dma.done [#allocation6], 1024
        $region56: #{tpu_custom_call.1} parent=51 // pred_fallthru
          _
        // Predicated region
        $region57: #{tpu_custom_call.1} parent=51 // pred_check
          %p328 = pneg %p96
        $region58: #{tpu_custom_call.1} parent=51 // pred_check_branch
          %330 = sbr.rel (%p328) target = $region60
        $region59: #{tpu_custom_call.1} parent=51 // pred_region
          %332 = dma.done [#allocation9], 9216
        $region60: #{tpu_custom_call.1} parent=51 // pred_fallthru
          _
        // Predicated region
        $region61: #{tpu_custom_call.1} parent=51 // pred_check
          %p333 = pneg %p138
        $region62: #{tpu_custom_call.1} parent=51 // pred_check_branch
          %335 = sbr.rel (%p333) target = $region64
        $region63: #{tpu_custom_call.1} parent=51 // pred_region
          %337 = dma.done [#allocation9], 1024
        $region64: #{tpu_custom_call.1} parent=51 // pred_fallthru
          _
        // Predicated region
        $region65: #{tpu_custom_call.1} parent=51 // pred_check
          %p338 = pneg %p180
        $region66: #{tpu_custom_call.1} parent=51 // pred_check_branch
          %340 = sbr.rel (%p338) target = $region68
        $region67: #{tpu_custom_call.1} parent=51 // pred_region
          %342 = dma.done [#allocation12], 1024
        $region68: #{tpu_custom_call.1} parent=51 // pred_fallthru
          _
        %p343 = pneg %p54
        %p344 = pneg %p51
        %p345 = pneg %p75
        %p346 = pneg %p72
        %p347 = pneg %p96
        %p348 = pneg %p93
        %p349 = pneg %p117
        %p350 = pneg %p114
        %p351 = pneg %p138
        %p352 = pneg %p135
        %p353 = pneg %p159
        %p354 = pneg %p156
        %p355 = pneg %p180
        %p356 = pneg %p177
        %p357 = pneg %p201
        %p358 = pneg %p198
        %p359 = pneg %p229
        %p360 = pneg %p226
        %s361 = sand.u32 %s216, 1
        %s362 = scalar_lea.sflag [#allocation7], %s361
        %s363 = sand.u32 %s216, 1
        %s364 = smul.addr %s363, 64
        %s365 = scalar_lea.vmem [#allocation13], %s364
        %s366 = smul.u32 8, %s31
        %p368 = scmp.lt.s32.totalorder %s31, 0
        %s369 = ssub.s32 0, %s31
        %s370 = scalar_select %p368, %s369, %s31
        %s371 = sand.u32 %s370, 1
        %s372 = ssub.s32 0, %s371
        %s373 = scalar_select %p368, %s372, %s371
        %p374 = scmp.ne.s32.totalorder %s373, 0
        %p375 = scmp.lt.s32.totalorder %s373, 0
        %p376 = pnand %p375, %p374
        %p377 = pneg %p376
        %s378 = sadd.s32 %s373, 2
        %s379 = scalar_select %p377, %s378, %s373
        %p380 = scmp.eq.s32.totalorder %s31, 0
        // Predicated region
        $region69: #{tpu_custom_call.1} parent=51 // pred_check
          %p381 = pneg %p380
        $region70: #{tpu_custom_call.1} parent=51 // pred_check_branch
          %383 = sbr.rel (%p381) target = $region72
        $region71: #{tpu_custom_call.1} parent=51 // pred_region
          %s384 = smul.u32 %s30, 10
          %s385 = smul.addr %s384, 4
          %s386 = scalar_lea.hbm %s0, %s385
          // Predicated region
          $region73: #{tpu_custom_call.1} parent=71 // pred_check
            _
          $region74: #{tpu_custom_call.1} parent=71 // pred_check_branch
            %388 = sbr.rel target = $region76
          $region75: #{tpu_custom_call.1} parent=71 // pred_region
            %389 = sst [smem:[#allocation16]] [#allocation15]
            %390 = sst [smem:[#allocation17]] [#allocation14]
          $region76: #{tpu_custom_call.1} parent=71 // pred_fallthru
            _
          %392 = shalt.err (0)
          %s394 = sshll.u32 %s386, 4
          %s395 = int_to_ptr.hbm [resolvable:$true] %s394
          %s396 = sshll.u32 [#allocation2], 4
          %s397 = int_to_ptr.vmem [resolvable:$true] %s396
          %399 = dma.hbm_to_vmem [thread:$0]  %s395, 640, %s397, [#allocation4]
        $region72: #{tpu_custom_call.1} parent=51 // pred_fallthru
          _
        %s400 = smul.u32 %s379, 10
        %s401 = smul.addr %s400, 4
        %s402 = scalar_lea.vmem [#allocation2], %s401
        %s403 = scalar_lea.sflag [#allocation4], %s379
        %s404 = smul.u32 4, 10
        %s405 = smul.u32 %s404, 1
        %s406 = smul.u32 %s405, 1
        %s407 = sshll.u32 %s406, 4
        %408 = dma.done %s403, %s407
        %s409 = sadd.s32 %s31, 1
        %p410 = scmp.lt.s32.totalorder %s409, 1
        // Predicated region
        $region77: #{tpu_custom_call.1} parent=51 // pred_check
          %p411 = pneg %p410
        $region78: #{tpu_custom_call.1} parent=51 // pred_check_branch
          %413 = sbr.rel (%p411) target = $region80
        $region79: #{tpu_custom_call.1} parent=51 // pred_region
          %s414 = ssub.s32 1, %s379
          %s415 = smul.u32 %s409, 8
          %s416 = smul.u32 %s30, 10
          %s417 = sadd.s32 %s415, %s416
          %s418 = smul.addr %s417, 4
          %s419 = scalar_lea.hbm %s0, %s418
          %s420 = smul.u32 %s414, 10
          %s421 = smul.addr %s420, 4
          %s422 = scalar_lea.vmem [#allocation2], %s421
          %s423 = scalar_lea.sflag [#allocation4], %s414
          // Predicated region
          $region81: #{tpu_custom_call.1} parent=79 // pred_check
            _
          $region82: #{tpu_custom_call.1} parent=79 // pred_check_branch
            %425 = sbr.rel target = $region84
          $region83: #{tpu_custom_call.1} parent=79 // pred_region
            %426 = sst [smem:[#allocation16]] [#allocation19]
            %427 = sst [smem:[#allocation17]] [#allocation18]
          $region84: #{tpu_custom_call.1} parent=79 // pred_fallthru
            _
          %429 = shalt.err (0)
          %s431 = sshll.u32 %s419, 4
          %s432 = int_to_ptr.hbm [resolvable:$true] %s431
          %s433 = sshll.u32 %s422, 4
          %s434 = int_to_ptr.vmem [resolvable:$true] %s433
          %436 = dma.hbm_to_vmem [thread:$0]  %s432, 640, %s434, %s423
        $region80: #{tpu_custom_call.1} parent=51 // pred_fallthru
          _
        %v437 = vld [vmem:[%s402] sm:$0xf]
        %v438 = vld [vmem:[%s402 + $0x4] sm:$0xf]
        %v439 = vld [vmem:[%s402 + $0x8] sm:$0xf]
        %v440 = vld [vmem:[%s402 + $0xc] sm:$0xf]
        %v441 = vld [vmem:[%s402 + $0x10] sm:$0xf]
        %v442 = vld [vmem:[%s402 + $0x14] sm:$0xf]
        %v443 = vld [vmem:[%s402 + $0x18] sm:$0xf]
        %v444 = vld [vmem:[%s402 + $0x1c] sm:$0xf]
        %v445 = vld [vmem:[%s402 + $0x20] sm:$0xf]
        %v446 = vld [vmem:[%s402 + $0x24] sm:$0xf]
        %v447 = vld [vmem:[#allocation5] sm:$0xf]
        %v448 = vld [vmem:[#allocation5 + $0x4] sm:$0xf]
        %v449 = vld [vmem:[#allocation5 + $0x8] sm:$0xf]
        %v450 = vld [vmem:[#allocation5 + $0xc] sm:$0xf]
        %v451 = vld [vmem:[#allocation5 + $0x10] sm:$0xf]
        %v452 = vld [vmem:[#allocation5 + $0x14] sm:$0xf]
        %v453 = vld [vmem:[#allocation5 + $0x18] sm:$0xf]
        %v454 = vld [vmem:[#allocation5 + $0x1c] sm:$0xf]
        %v455 = vld [vmem:[#allocation5 + $0x20] sm:$0xf]
        %v456 = vld [vmem:[#allocation5 + $0x24] sm:$0xf]
        %v457 = vld [vmem:[#allocation5 + $0x28] sm:$0xf]
        %v458 = vld [vmem:[#allocation5 + $0x2c] sm:$0xf]
        %v459 = vld [vmem:[#allocation5 + $0x30] sm:$0xf]
        %v460 = vld [vmem:[#allocation5 + $0x34] sm:$0xf]
        %v461 = vld [vmem:[#allocation5 + $0x38] sm:$0xf]
        %v462 = vld [vmem:[#allocation5 + $0x3c] sm:$0xf]
        %v463 = vld [vmem:[%s2] sm:$0x1]
        %v465 = vperm.slane %v463, 0
        %v477 = vunpack.c.l.b16 %v437
        %v478 = vunpack.c.l.b16 %v438
        %v479 = vunpack.c.l.b16 %v439
        %v480 = vunpack.c.l.b16 %v440
        %v481 = vunpack.c.l.b16 %v441
        %v482 = vunpack.c.l.b16 %v442
        %v483 = vunpack.c.l.b16 %v443
        %v484 = vunpack.c.l.b16 %v444
        %v485 = vunpack.c.l.b16 %v445
        %v486 = vunpack.c.l.b16 %v446
        %v487 = vpack.c.b16 %v478, %v477
        %v488 = vpack.c.b16 %v480, %v479
        %v489 = vpack.c.b16 %v482, %v481
        %v490 = vpack.c.b16 %v484, %v483
        %v491 = vpack.c.b16 %v486, %v485
        %v513 = vunpack.c.l.b16 %v447
        %v514 = vunpack.c.l.b16 %v448
        %v515 = vunpack.c.l.b16 %v449
        %v516 = vunpack.c.l.b16 %v450
        %v517 = vunpack.c.l.b16 %v451
        %v518 = vunpack.c.l.b16 %v452
        %v519 = vunpack.c.l.b16 %v453
        %v520 = vunpack.c.l.b16 %v454
        %v521 = vunpack.c.l.b16 %v455
        %v522 = vunpack.c.l.b16 %v456
        %v523 = vunpack.c.l.b16 %v457
        %v524 = vunpack.c.l.b16 %v458
        %v525 = vunpack.c.l.b16 %v459
        %v526 = vunpack.c.l.b16 %v460
        %v527 = vunpack.c.l.b16 %v461
        %v528 = vunpack.c.l.b16 %v462
        %v529 = vpack.c.b16 %v514, %v513
        %v530 = vpack.c.b16 %v516, %v515
        %v531 = vpack.c.b16 %v518, %v517
        %v532 = vpack.c.b16 %v520, %v519
        %v533 = vpack.c.b16 %v522, %v521
        %v534 = vpack.c.b16 %v524, %v523
        %v535 = vpack.c.b16 %v526, %v525
        %v536 = vpack.c.b16 %v528, %v527
        %545 = vmatpush.bf16.msra.mxu0 %v536
        %546 = vmatpush.bf16.msra.mxu0 %v535
        %547 = vmatpush.bf16.msra.mxu0 %v534
        %548 = vmatpush.bf16.msra.mxu0 %v533
        %549 = vmatpush.bf16.msra.mxu0 %v532
        %550 = vmatpush.bf16.msra.mxu0 %v531
        %551 = vmatpush.bf16.msra.mxu0 %v530
        %552 = vmatpush.bf16.msra.mxu0 %v529
        %553 = vmatmul.bf16.gmra.mxu0 %v487
        %v554 = vpop.f32.mrf.mxu0
        %v555 = vadd.f32 %v465, %v554
        %v556 = vpop.f32.mrf.mxu0
        %v557 = vadd.f32 %v465, %v556
        %558 = vmatmul.bf16.gmra.mxu0 %v488
        %v559 = vpop.f32.mrf.mxu0
        %v560 = vadd.f32 %v465, %v559
        %v561 = vpop.f32.mrf.mxu0
        %v562 = vadd.f32 %v465, %v561
        %563 = vmatmul.bf16.gmra.mxu0 %v489
        %v564 = vpop.f32.mrf.mxu0
        %v565 = vadd.f32 %v465, %v564
        %v566 = vpop.f32.mrf.mxu0
        %v567 = vadd.f32 %v465, %v566
        %568 = vmatmul.bf16.gmra.mxu0 %v490
        %v569 = vpop.f32.mrf.mxu0
        %v570 = vadd.f32 %v465, %v569
        %v571 = vpop.f32.mrf.mxu0
        %v572 = vadd.f32 %v465, %v571
        %573 = vmatmul.bf16.gmra.mxu0 %v491
        %v574 = vpop.f32.mrf.mxu0
        %v575 = vadd.f32 %v465, %v574
        %v576 = vpop.f32.mrf.mxu0
        %v577 = vadd.f32 %v465, %v576
        %578 = vdwg.mxu0
        %s579 = smul.u32 %s31, 8
        %s580 = ssub.s32 %s579, 1
        %v581 = vstv %s580
        %v582 = vadd.s32 %v581, 1
        %v583 = vadd.s32 %v581, 2
        %v584 = vadd.s32 %v581, 3
        %v585 = vadd.s32 %v581, 4
        %v586 = vadd.s32 %v581, 5
        %v587 = vadd.s32 %v581, 6
        %v588 = vadd.s32 %v581, 7
        %v589 = vadd.s32 %v581, 8
        %v590 = vadd.s32 %v581, 9
        %vm591 = vcmp.ge.s32.totalorder %v581, 0
        %vm592 = vcmp.ge.s32.totalorder %v582, 0
        %vm593 = vcmp.ge.s32.totalorder %v583, 0
        %vm594 = vcmp.ge.s32.totalorder %v584, 0
        %vm595 = vcmp.ge.s32.totalorder %v585, 0
        %vm596 = vcmp.ge.s32.totalorder %v586, 0
        %vm597 = vcmp.ge.s32.totalorder %v587, 0
        %vm598 = vcmp.ge.s32.totalorder %v588, 0
        %vm599 = vcmp.ge.s32.totalorder %v589, 0
        %vm600 = vcmp.ge.s32.totalorder %v590, 0
        %vm601 = vcmp.lt.s32.totalorder %v581, 8
        %vm602 = vcmp.lt.s32.totalorder %v582, 8
        %vm603 = vcmp.lt.s32.totalorder %v583, 8
        %vm604 = vcmp.lt.s32.totalorder %v584, 8
        %vm605 = vcmp.lt.s32.totalorder %v585, 8
        %vm606 = vcmp.lt.s32.totalorder %v586, 8
        %vm607 = vcmp.lt.s32.totalorder %v587, 8
        %vm608 = vcmp.lt.s32.totalorder %v588, 8
        %vm609 = vcmp.lt.s32.totalorder %v589, 8
        %vm610 = vcmp.lt.s32.totalorder %v590, 8
        %vm611 = vmand %vm591, %vm601
        %vm612 = vmand %vm592, %vm602
        %vm613 = vmand %vm593, %vm603
        %vm614 = vmand %vm594, %vm604
        %vm615 = vmand %vm595, %vm605
        %vm616 = vmand %vm596, %vm606
        %vm617 = vmand %vm597, %vm607
        %vm618 = vmand %vm598, %vm608
        %vm619 = vmand %vm599, %vm609
        %vm620 = vmand %vm600, %vm610
        %v621 = vsel %vm611, 1, 0
        %v622 = vsel %vm612, 1, 0
        %v623 = vsel %vm613, 1, 0
        %v624 = vsel %vm614, 1, 0
        %v625 = vsel %vm615, 1, 0
        %v626 = vsel %vm616, 1, 0
        %v627 = vsel %vm617, 1, 0
        %v628 = vsel %vm618, 1, 0
        %v629 = vsel %vm619, 1, 0
        %v630 = vsel %vm620, 1, 0
        %vm631 = vcmp.eq.s32.totalorder %v621, 1
        %vm632 = vcmp.eq.s32.totalorder %v622, 1
        %vm633 = vcmp.eq.s32.totalorder %v623, 1
        %vm634 = vcmp.eq.s32.totalorder %v624, 1
        %vm635 = vcmp.eq.s32.totalorder %v625, 1
        %vm636 = vcmp.eq.s32.totalorder %v626, 1
        %vm637 = vcmp.eq.s32.totalorder %v627, 1
        %vm638 = vcmp.eq.s32.totalorder %v628, 1
        %vm639 = vcmp.eq.s32.totalorder %v629, 1
        %vm640 = vcmp.eq.s32.totalorder %v630, 1
        %v641 = vsel %vm631, %v555, 0.0
        %v642 = vsel %vm632, %v557, 0.0
        %v643 = vsel %vm633, %v560, 0.0
        %v644 = vsel %vm634, %v562, 0.0
        %v645 = vsel %vm635, %v565, 0.0
        %v646 = vsel %vm636, %v567, 0.0
        %v647 = vsel %vm637, %v570, 0.0
        %v648 = vsel %vm638, %v572, 0.0
        %v649 = vsel %vm639, %v575, 0.0
        %v650 = vsel %vm640, %v577, 0.0
        %v651 = vpack.c.bf16 %v641, %v641
        %v652 = vpack.c.bf16 %v642, %v642
        %v653 = vpack.c.bf16 %v643, %v643
        %v654 = vpack.c.bf16 %v644, %v644
        %v655 = vpack.c.bf16 %v645, %v645
        %v656 = vpack.c.bf16 %v646, %v646
        %v657 = vpack.c.bf16 %v647, %v647
        %v658 = vpack.c.bf16 %v648, %v648
        %v659 = vpack.c.bf16 %v649, %v649
        %v660 = vpack.c.bf16 %v650, %v650
        %v671 = vunpack.c.l.b16 %v651
        %v672 = vunpack.c.l.b16 %v652
        %v673 = vunpack.c.l.b16 %v653
        %v674 = vunpack.c.l.b16 %v654
        %v675 = vunpack.c.l.b16 %v655
        %v676 = vunpack.c.l.b16 %v656
        %v677 = vunpack.c.l.b16 %v657
        %v678 = vunpack.c.l.b16 %v658
        %v679 = vunpack.c.l.b16 %v659
        %v680 = vunpack.c.l.b16 %v660
        %v681 = vpack.c.b16 %v671, %v671
        %v682 = vpack.c.b16 %v672, %v672
        %v683 = vpack.c.b16 %v673, %v673
        %v684 = vpack.c.b16 %v674, %v674
        %v685 = vpack.c.b16 %v675, %v675
        %v686 = vpack.c.b16 %v676, %v676
        %v687 = vpack.c.b16 %v677, %v677
        %v688 = vpack.c.b16 %v678, %v678
        %v689 = vpack.c.b16 %v679, %v679
        %v690 = vpack.c.b16 %v680, %v680
        %v692 = vshrl.u32 %v681, 16
        %v694 = vrot.slane %v692, 7
        %v695 = vshll.u32 %v681, 16
        %v697 = vor.u32 %v694, %v695
        %v699 = vshrl.u32 %v682, 16
        %v701 = vrot.slane %v699, 7
        %v702 = vshll.u32 %v682, 16
        %v704 = vor.u32 %v701, %v702
        %v706 = vshrl.u32 %v683, 16
        %v708 = vrot.slane %v706, 7
        %v709 = vshll.u32 %v683, 16
        %v711 = vor.u32 %v708, %v709
        %v713 = vshrl.u32 %v684, 16
        %v715 = vrot.slane %v713, 7
        %v716 = vshll.u32 %v684, 16
        %v718 = vor.u32 %v715, %v716
        %v720 = vshrl.u32 %v685, 16
        %v722 = vrot.slane %v720, 7
        %v723 = vshll.u32 %v685, 16
        %v725 = vor.u32 %v722, %v723
        %v727 = vshrl.u32 %v686, 16
        %v729 = vrot.slane %v727, 7
        %v730 = vshll.u32 %v686, 16
        %v732 = vor.u32 %v729, %v730
        %v734 = vshrl.u32 %v687, 16
        %v736 = vrot.slane %v734, 7
        %v737 = vshll.u32 %v687, 16
        %v739 = vor.u32 %v736, %v737
        %v741 = vshrl.u32 %v688, 16
        %v743 = vrot.slane %v741, 7
        %v744 = vshll.u32 %v688, 16
        %v746 = vor.u32 %v743, %v744
        %v748 = vshrl.u32 %v689, 16
        %v750 = vrot.slane %v748, 7
        %v751 = vshll.u32 %v689, 16
        %v753 = vor.u32 %v750, %v751
        %v755 = vshrl.u32 %v690, 16
        %v757 = vrot.slane %v755, 7
        %v758 = vshll.u32 %v690, 16
        %v760 = vor.u32 %v757, %v758
        %vm771 = vcmask 1040384
        %vm772 = vsmask.f32 256
        %vm773 = vmand %vm771, %vm772
        %v774 = vsel %vm773, 0, %v697
        %v775 = vsel %vm773, 0, %v704
        %v776 = vsel %vm773, 0, %v711
        %v777 = vsel %vm773, 0, %v718
        %v778 = vsel %vm773, 0, %v725
        %v779 = vsel %vm773, 0, %v732
        %v780 = vsel %vm773, 0, %v739
        %v781 = vsel %vm773, 0, %v746
        %v782 = vsel %vm773, 0, %v753
        %v783 = vsel %vm773, 0, %v760
        %v784 = vrot.slane %v695, 1
        %v785 = vor.u32 %v692, %v784
        %v786 = vrot.slane %v702, 1
        %v787 = vor.u32 %v699, %v786
        %v788 = vrot.slane %v709, 1
        %v789 = vor.u32 %v706, %v788
        %v790 = vrot.slane %v716, 1
        %v791 = vor.u32 %v713, %v790
        %v792 = vrot.slane %v723, 1
        %v793 = vor.u32 %v720, %v792
        %v794 = vrot.slane %v730, 1
        %v795 = vor.u32 %v727, %v794
        %v796 = vrot.slane %v737, 1
        %v797 = vor.u32 %v734, %v796
        %v798 = vrot.slane %v744, 1
        %v799 = vor.u32 %v741, %v798
        %v800 = vrot.slane %v751, 1
        %v801 = vor.u32 %v748, %v800
        %v802 = vrot.slane %v758, 1
        %v803 = vor.u32 %v755, %v802
        %vm814 = vcmask 1043456
        %vm815 = vsmask.f32 3328
        %vm816 = vmand %vm814, %vm815
        %v817 = vsel %vm816, %v785, 0
        %v818 = vsel %vm816, %v787, 0
        %v819 = vsel %vm816, %v789, 0
        %v820 = vsel %vm816, %v791, 0
        %v821 = vsel %vm816, %v793, 0
        %v822 = vsel %vm816, %v795, 0
        %v823 = vsel %vm816, %v797, 0
        %v824 = vsel %vm816, %v799, 0
        %v825 = vsel %vm816, %v801, 0
        %v826 = vsel %vm816, %v803, 0
        %827 = vst [vmem:[#allocation3] sm:$0xf] %v774
        %828 = vst [vmem:[#allocation3 + $0xc] sm:$0xf] %v775
        %829 = vst [vmem:[#allocation3 + $0x18] sm:$0xf] %v776
        %830 = vst [vmem:[#allocation3 + $0x24] sm:$0xf] %v777
        %831 = vst [vmem:[#allocation3 + $0x30] sm:$0xf] %v778
        %832 = vst [vmem:[#allocation3 + $0x3c] sm:$0xf] %v779
        %833 = vst [vmem:[#allocation3 + $0x48] sm:$0xf] %v780
        %834 = vst [vmem:[#allocation3 + $0x54] sm:$0xf] %v781
        %835 = vst [vmem:[#allocation3 + $0x60] sm:$0xf] %v782
        %836 = vst [vmem:[#allocation3 + $0x6c] sm:$0xf] %v783
        %837 = vst [vmem:[#allocation3 + $0x4] sm:$0xf] %v651
        %838 = vst [vmem:[#allocation3 + $0x10] sm:$0xf] %v652
        %839 = vst [vmem:[#allocation3 + $0x1c] sm:$0xf] %v653
        %840 = vst [vmem:[#allocation3 + $0x28] sm:$0xf] %v654
        %841 = vst [vmem:[#allocation3 + $0x34] sm:$0xf] %v655
        %842 = vst [vmem:[#allocation3 + $0x40] sm:$0xf] %v656
        %843 = vst [vmem:[#allocation3 + $0x4c] sm:$0xf] %v657
        %844 = vst [vmem:[#allocation3 + $0x58] sm:$0xf] %v658
        %845 = vst [vmem:[#allocation3 + $0x64] sm:$0xf] %v659
        %846 = vst [vmem:[#allocation3 + $0x70] sm:$0xf] %v660
        %847 = vst [vmem:[#allocation3 + $0x8] sm:$0xf] %v817
        %848 = vst [vmem:[#allocation3 + $0x14] sm:$0xf] %v818
        %849 = vst [vmem:[#allocation3 + $0x20] sm:$0xf] %v819
        %850 = vst [vmem:[#allocation3 + $0x2c] sm:$0xf] %v820
        %851 = vst [vmem:[#allocation3 + $0x38] sm:$0xf] %v821
        %852 = vst [vmem:[#allocation3 + $0x44] sm:$0xf] %v822
        %853 = vst [vmem:[#allocation3 + $0x50] sm:$0xf] %v823
        %854 = vst [vmem:[#allocation3 + $0x5c] sm:$0xf] %v824
        %855 = vst [vmem:[#allocation3 + $0x68] sm:$0xf] %v825
        %856 = vst [vmem:[#allocation3 + $0x74] sm:$0xf] %v826
        %v857 = vld [vmem:[#allocation3] sm:$0xff]
        %v858 = vld [vmem:[#allocation3 + $0x8] sm:$0xf]
        %v859 = vld [vmem:[#allocation3 + $0xc] sm:$0xff]
        %v860 = vld [vmem:[#allocation3 + $0x14] sm:$0xf]
        %v861 = vld [vmem:[#allocation3 + $0x18] sm:$0xff]
        %v862 = vld [vmem:[#allocation3 + $0x20] sm:$0xf]
        %v863 = vld [vmem:[#allocation3 + $0x24] sm:$0xff]
        %v864 = vld [vmem:[#allocation3 + $0x2c] sm:$0xf]
        %v865 = vld [vmem:[#allocation3 + $0x30] sm:$0xff]
        %v866 = vld [vmem:[#allocation3 + $0x38] sm:$0xf]
        %v867 = vld [vmem:[#allocation3 + $0x3c] sm:$0xff]
        %v868 = vld [vmem:[#allocation3 + $0x44] sm:$0xf]
        %v869 = vld [vmem:[#allocation3 + $0x48] sm:$0xff]
        %v870 = vld [vmem:[#allocation3 + $0x50] sm:$0xf]
        %v871 = vld [vmem:[#allocation3 + $0x54] sm:$0xff]
        %v872 = vld [vmem:[#allocation3 + $0x5c] sm:$0xf]
        %v873 = vld [vmem:[#allocation8] sm:$0xf]
        %v874 = vld [vmem:[#allocation8 + $0x4] sm:$0xf]
        %v875 = vld [vmem:[#allocation8 + $0x8] sm:$0xf]
        %v876 = vld [vmem:[#allocation8 + $0xc] sm:$0xf]
        %v877 = vld [vmem:[#allocation8 + $0x10] sm:$0xf]
        %v878 = vld [vmem:[#allocation8 + $0x14] sm:$0xf]
        %v879 = vld [vmem:[#allocation8 + $0x18] sm:$0xf]
        %v880 = vld [vmem:[#allocation8 + $0x1c] sm:$0xf]
        %v881 = vld [vmem:[#allocation8 + $0x20] sm:$0xf]
        %v882 = vld [vmem:[#allocation8 + $0x24] sm:$0xf]
        %v883 = vld [vmem:[#allocation8 + $0x28] sm:$0xf]
        %v884 = vld [vmem:[#allocation8 + $0x2c] sm:$0xf]
        %v885 = vld [vmem:[#allocation8 + $0x30] sm:$0xf]
        %v886 = vld [vmem:[#allocation8 + $0x34] sm:$0xf]
        %v887 = vld [vmem:[#allocation8 + $0x38] sm:$0xf]
        %v888 = vld [vmem:[#allocation8 + $0x3c] sm:$0xf]
        %v889 = vld [vmem:[#allocation8 + $0x40] sm:$0xf]
        %v890 = vld [vmem:[#allocation8 + $0x44] sm:$0xf]
        %v891 = vld [vmem:[#allocation8 + $0x48] sm:$0xf]
        %v892 = vld [vmem:[#allocation8 + $0x4c] sm:$0xf]
        %v893 = vld [vmem:[#allocation8 + $0x50] sm:$0xf]
        %v894 = vld [vmem:[#allocation8 + $0x54] sm:$0xf]
        %v895 = vld [vmem:[#allocation8 + $0x58] sm:$0xf]
        %v896 = vld [vmem:[#allocation8 + $0x5c] sm:$0xf]
        %v897 = vld [vmem:[#allocation8 + $0x60] sm:$0xf]
        %v898 = vld [vmem:[#allocation8 + $0x64] sm:$0xf]
        %v899 = vld [vmem:[#allocation8 + $0x68] sm:$0xf]
        %v900 = vld [vmem:[#allocation8 + $0x6c] sm:$0xf]
        %v901 = vld [vmem:[#allocation8 + $0x70] sm:$0xf]
        %v902 = vld [vmem:[#allocation8 + $0x74] sm:$0xf]
        %v903 = vld [vmem:[#allocation8 + $0x78] sm:$0xf]
        %v904 = vld [vmem:[#allocation8 + $0x7c] sm:$0xf]
        %v905 = vld [vmem:[#allocation8 + $0x80] sm:$0xf]
        %v906 = vld [vmem:[#allocation8 + $0x84] sm:$0xf]
        %v907 = vld [vmem:[#allocation8 + $0x88] sm:$0xf]
        %v908 = vld [vmem:[#allocation8 + $0x8c] sm:$0xf]
        %v909 = vld [vmem:[#allocation8 + $0x90] sm:$0xf]
        %v910 = vld [vmem:[#allocation8 + $0x94] sm:$0xf]
        %v911 = vld [vmem:[#allocation8 + $0x98] sm:$0xf]
        %v912 = vld [vmem:[#allocation8 + $0x9c] sm:$0xf]
        %v913 = vld [vmem:[#allocation8 + $0xa0] sm:$0xf]
        %v914 = vld [vmem:[#allocation8 + $0xa4] sm:$0xf]
        %v915 = vld [vmem:[#allocation8 + $0xa8] sm:$0xf]
        %v916 = vld [vmem:[#allocation8 + $0xac] sm:$0xf]
        %v917 = vld [vmem:[#allocation8 + $0xb0] sm:$0xf]
        %v918 = vld [vmem:[#allocation8 + $0xb4] sm:$0xf]
        %v919 = vld [vmem:[#allocation8 + $0xb8] sm:$0xf]
        %v920 = vld [vmem:[#allocation8 + $0xbc] sm:$0xf]
        %v921 = vld [vmem:[#allocation3 + $0x60] sm:$0xff]
        %v922 = vld [vmem:[#allocation3 + $0x68] sm:$0xf]
        %s923 = scalar_lea.vmem [#allocation8], 192
        %v924 = vld [vmem:[%s923] sm:$0xf]
        %v925 = vld [vmem:[%s923 + $0x4] sm:$0xf]
        %v926 = vld [vmem:[%s923 + $0x8] sm:$0xf]
        %v927 = vld [vmem:[%s923 + $0xc] sm:$0xf]
        %v928 = vld [vmem:[%s923 + $0x10] sm:$0xf]
        %v929 = vld [vmem:[%s923 + $0x14] sm:$0xf]
        %v930 = vld [vmem:[%s923 + $0x18] sm:$0xf]
        %v931 = vld [vmem:[%s923 + $0x1c] sm:$0xf]
        %v932 = vld [vmem:[%s923 + $0x20] sm:$0xf]
        %v933 = vld [vmem:[%s923 + $0x24] sm:$0xf]
        %v934 = vld [vmem:[%s923 + $0x28] sm:$0xf]
        %v935 = vld [vmem:[%s923 + $0x2c] sm:$0xf]
        %v936 = vld [vmem:[%s923 + $0x30] sm:$0xf]
        %v937 = vld [vmem:[%s923 + $0x34] sm:$0xf]
        %v938 = vld [vmem:[%s923 + $0x38] sm:$0xf]
        %v939 = vld [vmem:[%s923 + $0x3c] sm:$0xf]
        %v940 = vld [vmem:[%s923 + $0x40] sm:$0xf]
        %v941 = vld [vmem:[%s923 + $0x44] sm:$0xf]
        %v942 = vld [vmem:[%s923 + $0x48] sm:$0xf]
        %v943 = vld [vmem:[%s923 + $0x4c] sm:$0xf]
        %v944 = vld [vmem:[%s923 + $0x50] sm:$0xf]
        %v945 = vld [vmem:[%s923 + $0x54] sm:$0xf]
        %v946 = vld [vmem:[%s923 + $0x58] sm:$0xf]
        %v947 = vld [vmem:[%s923 + $0x5c] sm:$0xf]
        %v948 = vld [vmem:[%s923 + $0x60] sm:$0xf]
        %v949 = vld [vmem:[%s923 + $0x64] sm:$0xf]
        %v950 = vld [vmem:[%s923 + $0x68] sm:$0xf]
        %v951 = vld [vmem:[%s923 + $0x6c] sm:$0xf]
        %v952 = vld [vmem:[%s923 + $0x70] sm:$0xf]
        %v953 = vld [vmem:[%s923 + $0x74] sm:$0xf]
        %v954 = vld [vmem:[%s923 + $0x78] sm:$0xf]
        %v955 = vld [vmem:[%s923 + $0x7c] sm:$0xf]
        %v956 = vld [vmem:[%s923 + $0x80] sm:$0xf]
        %v957 = vld [vmem:[%s923 + $0x84] sm:$0xf]
        %v958 = vld [vmem:[%s923 + $0x88] sm:$0xf]
        %v959 = vld [vmem:[%s923 + $0x8c] sm:$0xf]
        %v960 = vld [vmem:[%s923 + $0x90] sm:$0xf]
        %v961 = vld [vmem:[%s923 + $0x94] sm:$0xf]
        %v962 = vld [vmem:[%s923 + $0x98] sm:$0xf]
        %v963 = vld [vmem:[%s923 + $0x9c] sm:$0xf]
        %v964 = vld [vmem:[%s923 + $0xa0] sm:$0xf]
        %v965 = vld [vmem:[%s923 + $0xa4] sm:$0xf]
        %v966 = vld [vmem:[%s923 + $0xa8] sm:$0xf]
        %v967 = vld [vmem:[%s923 + $0xac] sm:$0xf]
        %v968 = vld [vmem:[%s923 + $0xb0] sm:$0xf]
        %v969 = vld [vmem:[%s923 + $0xb4] sm:$0xf]
        %v970 = vld [vmem:[%s923 + $0xb8] sm:$0xf]
        %v971 = vld [vmem:[%s923 + $0xbc] sm:$0xf]
        %v988 = vunpack.c.l.b16 %v859
        %v989 = vunpack.c.h.b16 %v859
        %v990 = vunpack.c.l.b16 %v860
        %v991 = vunpack.c.l.b16 %v861
        %v992 = vunpack.c.h.b16 %v861
        %v993 = vunpack.c.l.b16 %v862
        %v994 = vunpack.c.l.b16 %v863
        %v995 = vunpack.c.h.b16 %v863
        %v996 = vunpack.c.l.b16 %v864
        %v997 = vunpack.c.l.b16 %v865
        %v998 = vunpack.c.h.b16 %v865
        %v999 = vunpack.c.l.b16 %v866
        %v1000 = vunpack.c.l.b16 %v867
        %v1001 = vunpack.c.h.b16 %v867
        %v1002 = vunpack.c.l.b16 %v868
        %v1003 = vunpack.c.l.b16 %v869
        %v1004 = vunpack.c.h.b16 %v869
        %v1005 = vunpack.c.l.b16 %v870
        %v1006 = vunpack.c.l.b16 %v871
        %v1007 = vunpack.c.h.b16 %v871
        %v1008 = vunpack.c.l.b16 %v872
        %v1009 = vunpack.c.l.b16 %v921
        %v1010 = vunpack.c.h.b16 %v921
        %v1011 = vunpack.c.l.b16 %v922
        %v1012 = vpack.c.b16 %v991, %v988
        %v1013 = vpack.c.b16 %v992, %v989
        %v1014 = vpack.c.b16 %v993, %v990
        %v1015 = vpack.c.b16 %v997, %v994
        %v1016 = vpack.c.b16 %v998, %v995
        %v1017 = vpack.c.b16 %v999, %v996
        %v1018 = vpack.c.b16 %v1003, %v1000
        %v1019 = vpack.c.b16 %v1004, %v1001
        %v1020 = vpack.c.b16 %v1005, %v1002
        %v1021 = vpack.c.b16 %v1009, %v1006
        %v1022 = vpack.c.b16 %v1010, %v1007
        %v1023 = vpack.c.b16 %v1011, %v1008
        %v1084 = vunpack.c.l.b16 %v924
        %v1085 = vunpack.c.l.b16 %v925
        %v1086 = vunpack.c.l.b16 %v926
        %v1087 = vunpack.c.l.b16 %v927
        %v1088 = vunpack.c.l.b16 %v928
        %v1089 = vunpack.c.l.b16 %v929
        %v1090 = vunpack.c.l.b16 %v930
        %v1091 = vunpack.c.l.b16 %v931
        %v1092 = vunpack.c.l.b16 %v932
        %v1093 = vunpack.c.l.b16 %v933
        %v1094 = vunpack.c.l.b16 %v934
        %v1095 = vunpack.c.l.b16 %v935
        %v1096 = vunpack.c.l.b16 %v936
        %v1097 = vunpack.c.l.b16 %v937
        %v1098 = vunpack.c.l.b16 %v938
        %v1099 = vunpack.c.l.b16 %v939
        %v1100 = vunpack.c.l.b16 %v940
        %v1101 = vunpack.c.l.b16 %v941
        %v1102 = vunpack.c.l.b16 %v942
        %v1103 = vunpack.c.l.b16 %v943
        %v1104 = vunpack.c.l.b16 %v944
        %v1105 = vunpack.c.l.b16 %v945
        %v1106 = vunpack.c.l.b16 %v946
        %v1107 = vunpack.c.l.b16 %v947
        %v1108 = vunpack.c.l.b16 %v948
        %v1109 = vunpack.c.l.b16 %v949
        %v1110 = vunpack.c.l.b16 %v950
        %v1111 = vunpack.c.l.b16 %v951
        %v1112 = vunpack.c.l.b16 %v952
        %v1113 = vunpack.c.l.b16 %v953
        %v1114 = vunpack.c.l.b16 %v954
        %v1115 = vunpack.c.l.b16 %v955
        %v1116 = vunpack.c.l.b16 %v956
        %v1117 = vunpack.c.l.b16 %v957
        %v1118 = vunpack.c.l.b16 %v958
        %v1119 = vunpack.c.l.b16 %v959
        %v1120 = vunpack.c.l.b16 %v960
        %v1121 = vunpack.c.l.b16 %v961
        %v1122 = vunpack.c.l.b16 %v962
        %v1123 = vunpack.c.l.b16 %v963
        %v1124 = vunpack.c.l.b16 %v964
        %v1125 = vunpack.c.l.b16 %v965
        %v1126 = vunpack.c.l.b16 %v966
        %v1127 = vunpack.c.l.b16 %v967
        %v1128 = vunpack.c.l.b16 %v968
        %v1129 = vunpack.c.l.b16 %v969
        %v1130 = vunpack.c.l.b16 %v970
        %v1131 = vunpack.c.l.b16 %v971
        %v1132 = vpack.c.b16 %v1085, %v1084
        %v1133 = vpack.c.b16 %v1087, %v1086
        %v1134 = vpack.c.b16 %v1089, %v1088
        %v1135 = vpack.c.b16 %v1091, %v1090
        %v1136 = vpack.c.b16 %v1093, %v1092
        %v1137 = vpack.c.b16 %v1095, %v1094
        %v1138 = vpack.c.b16 %v1097, %v1096
        %v1139 = vpack.c.b16 %v1099, %v1098
        %v1140 = vpack.c.b16 %v1101, %v1100
        %v1141 = vpack.c.b16 %v1103, %v1102
        %v1142 = vpack.c.b16 %v1105, %v1104
        %v1143 = vpack.c.b16 %v1107, %v1106
        %v1144 = vpack.c.b16 %v1109, %v1108
        %v1145 = vpack.c.b16 %v1111, %v1110
        %v1146 = vpack.c.b16 %v1113, %v1112
        %v1147 = vpack.c.b16 %v1115, %v1114
        %v1148 = vpack.c.b16 %v1117, %v1116
        %v1149 = vpack.c.b16 %v1119, %v1118
        %v1150 = vpack.c.b16 %v1121, %v1120
        %v1151 = vpack.c.b16 %v1123, %v1122
        %v1152 = vpack.c.b16 %v1125, %v1124
        %v1153 = vpack.c.b16 %v1127, %v1126
        %v1154 = vpack.c.b16 %v1129, %v1128
        %v1155 = vpack.c.b16 %v1131, %v1130
        %1180 = vmatpush.bf16.msra.mxu0 %v1139
        %1181 = vmatpush.bf16.msra.mxu0 %v1138
        %1182 = vmatpush.bf16.msra.mxu0 %v1137
        %1183 = vmatpush.bf16.msra.mxu0 %v1136
        %1184 = vmatpush.bf16.msra.mxu0 %v1135
        %1185 = vmatpush.bf16.msra.mxu0 %v1134
        %1186 = vmatpush.bf16.msra.mxu0 %v1133
        %1187 = vmatpush.bf16.msra.mxu0 %v1132
        %1188 = vmatmul.bf16.gmra.mxu0 %v1012
        %v1189 = vpop.f32.mrf.mxu0
        %v1190 = vadd.f32 0.0, %v1189
        %v1191 = vpop.f32.mrf.mxu0
        %v1192 = vadd.f32 0.0, %v1191
        %1193 = vmatmul.bf16.gmra.mxu0 %v1015
        %v1194 = vpop.f32.mrf.mxu0
        %v1195 = vadd.f32 0.0, %v1194
        %v1196 = vpop.f32.mrf.mxu0
        %v1197 = vadd.f32 0.0, %v1196
        %1198 = vmatmul.bf16.gmra.mxu0 %v1018
        %v1199 = vpop.f32.mrf.mxu0
        %v1200 = vadd.f32 0.0, %v1199
        %v1201 = vpop.f32.mrf.mxu0
        %v1202 = vadd.f32 0.0, %v1201
        %1203 = vmatmul.bf16.gmra.mxu0 %v1021
        %v1204 = vpop.f32.mrf.mxu0
        %v1205 = vadd.f32 0.0, %v1204
        %v1206 = vpop.f32.mrf.mxu0
        %v1207 = vadd.f32 0.0, %v1206
        %1208 = vdwg.mxu0
        %1209 = vmatpush.bf16.msra.mxu0 %v1147
        %1210 = vmatpush.bf16.msra.mxu0 %v1146
        %1211 = vmatpush.bf16.msra.mxu0 %v1145
        %1212 = vmatpush.bf16.msra.mxu0 %v1144
        %1213 = vmatpush.bf16.msra.mxu0 %v1143
        %1214 = vmatpush.bf16.msra.mxu0 %v1142
        %1215 = vmatpush.bf16.msra.mxu0 %v1141
        %1216 = vmatpush.bf16.msra.mxu0 %v1140
        %1217 = vmatmul.bf16.gmra.mxu0 %v1013
        %v1218 = vpop.f32.mrf.mxu0
        %v1219 = vadd.f32 %v1190, %v1218
        %v1220 = vpop.f32.mrf.mxu0
        %v1221 = vadd.f32 %v1192, %v1220
        %1222 = vmatmul.bf16.gmra.mxu0 %v1016
        %v1223 = vpop.f32.mrf.mxu0
        %v1224 = vadd.f32 %v1195, %v1223
        %v1225 = vpop.f32.mrf.mxu0
        %v1226 = vadd.f32 %v1197, %v1225
        %1227 = vmatmul.bf16.gmra.mxu0 %v1019
        %v1228 = vpop.f32.mrf.mxu0
        %v1229 = vadd.f32 %v1200, %v1228
        %v1230 = vpop.f32.mrf.mxu0
        %v1231 = vadd.f32 %v1202, %v1230
        %1232 = vmatmul.bf16.gmra.mxu0 %v1022
        %v1233 = vpop.f32.mrf.mxu0
        %v1234 = vadd.f32 %v1205, %v1233
        %v1235 = vpop.f32.mrf.mxu0
        %v1236 = vadd.f32 %v1207, %v1235
        %1237 = vdwg.mxu0
        %1238 = vmatpush.bf16.msra.mxu0 %v1155
        %1239 = vmatpush.bf16.msra.mxu0 %v1154
        %1240 = vmatpush.bf16.msra.mxu0 %v1153
        %1241 = vmatpush.bf16.msra.mxu0 %v1152
        %1242 = vmatpush.bf16.msra.mxu0 %v1151
        %1243 = vmatpush.bf16.msra.mxu0 %v1150
        %1244 = vmatpush.bf16.msra.mxu0 %v1149
        %1245 = vmatpush.bf16.msra.mxu0 %v1148
        %1246 = vmatmul.bf16.gmra.mxu0 %v1014
        %v1247 = vpop.f32.mrf.mxu0
        %v1248 = vadd.f32 %v1219, %v1247
        %v1249 = vpop.f32.mrf.mxu0
        %v1250 = vadd.f32 %v1221, %v1249
        %1251 = vmatmul.bf16.gmra.mxu0 %v1017
        %v1252 = vpop.f32.mrf.mxu0
        %v1253 = vadd.f32 %v1224, %v1252
        %v1254 = vpop.f32.mrf.mxu0
        %v1255 = vadd.f32 %v1226, %v1254
        %1256 = vmatmul.bf16.gmra.mxu0 %v1020
        %v1257 = vpop.f32.mrf.mxu0
        %v1258 = vadd.f32 %v1229, %v1257
        %v1259 = vpop.f32.mrf.mxu0
        %v1260 = vadd.f32 %v1231, %v1259
        %1261 = vmatmul.bf16.gmra.mxu0 %v1023
        %v1262 = vpop.f32.mrf.mxu0
        %v1263 = vadd.f32 %v1234, %v1262
        %v1264 = vpop.f32.mrf.mxu0
        %v1265 = vadd.f32 %v1236, %v1264
        %1266 = vdwg.mxu0
        %v1269 = vunpack.c.l.b16 %v857
        %v1270 = vunpack.c.h.b16 %v857
        %v1271 = vunpack.c.l.b16 %v858
        %v1272 = vpack.c.b16 %v988, %v1269
        %v1273 = vpack.c.b16 %v989, %v1270
        %v1274 = vpack.c.b16 %v990, %v1271
        %v1275 = vpack.c.b16 %v994, %v991
        %v1276 = vpack.c.b16 %v995, %v992
        %v1277 = vpack.c.b16 %v996, %v993
        %v1278 = vpack.c.b16 %v1000, %v997
        %v1279 = vpack.c.b16 %v1001, %v998
        %v1280 = vpack.c.b16 %v1002, %v999
        %v1281 = vpack.c.b16 %v1006, %v1003
        %v1282 = vpack.c.b16 %v1007, %v1004
        %v1283 = vpack.c.b16 %v1008, %v1005
        %v1344 = vunpack.c.l.b16 %v873
        %v1345 = vunpack.c.l.b16 %v874
        %v1346 = vunpack.c.l.b16 %v875
        %v1347 = vunpack.c.l.b16 %v876
        %v1348 = vunpack.c.l.b16 %v877
        %v1349 = vunpack.c.l.b16 %v878
        %v1350 = vunpack.c.l.b16 %v879
        %v1351 = vunpack.c.l.b16 %v880
        %v1352 = vunpack.c.l.b16 %v881
        %v1353 = vunpack.c.l.b16 %v882
        %v1354 = vunpack.c.l.b16 %v883
        %v1355 = vunpack.c.l.b16 %v884
        %v1356 = vunpack.c.l.b16 %v885
        %v1357 = vunpack.c.l.b16 %v886
        %v1358 = vunpack.c.l.b16 %v887
        %v1359 = vunpack.c.l.b16 %v888
        %v1360 = vunpack.c.l.b16 %v889
        %v1361 = vunpack.c.l.b16 %v890
        %v1362 = vunpack.c.l.b16 %v891
        %v1363 = vunpack.c.l.b16 %v892
        %v1364 = vunpack.c.l.b16 %v893
        %v1365 = vunpack.c.l.b16 %v894
        %v1366 = vunpack.c.l.b16 %v895
        %v1367 = vunpack.c.l.b16 %v896
        %v1368 = vunpack.c.l.b16 %v897
        %v1369 = vunpack.c.l.b16 %v898
        %v1370 = vunpack.c.l.b16 %v899
        %v1371 = vunpack.c.l.b16 %v900
        %v1372 = vunpack.c.l.b16 %v901
        %v1373 = vunpack.c.l.b16 %v902
        %v1374 = vunpack.c.l.b16 %v903
        %v1375 = vunpack.c.l.b16 %v904
        %v1376 = vunpack.c.l.b16 %v905
        %v1377 = vunpack.c.l.b16 %v906
        %v1378 = vunpack.c.l.b16 %v907
        %v1379 = vunpack.c.l.b16 %v908
        %v1380 = vunpack.c.l.b16 %v909
        %v1381 = vunpack.c.l.b16 %v910
        %v1382 = vunpack.c.l.b16 %v911
        %v1383 = vunpack.c.l.b16 %v912
        %v1384 = vunpack.c.l.b16 %v913
        %v1385 = vunpack.c.l.b16 %v914
        %v1386 = vunpack.c.l.b16 %v915
        %v1387 = vunpack.c.l.b16 %v916
        %v1388 = vunpack.c.l.b16 %v917
        %v1389 = vunpack.c.l.b16 %v918
        %v1390 = vunpack.c.l.b16 %v919
        %v1391 = vunpack.c.l.b16 %v920
        %v1392 = vpack.c.b16 %v1345, %v1344
        %v1393 = vpack.c.b16 %v1347, %v1346
        %v1394 = vpack.c.b16 %v1349, %v1348
        %v1395 = vpack.c.b16 %v1351, %v1350
        %v1396 = vpack.c.b16 %v1353, %v1352
        %v1397 = vpack.c.b16 %v1355, %v1354
        %v1398 = vpack.c.b16 %v1357, %v1356
        %v1399 = vpack.c.b16 %v1359, %v1358
        %v1400 = vpack.c.b16 %v1361, %v1360
        %v1401 = vpack.c.b16 %v1363, %v1362
        %v1402 = vpack.c.b16 %v1365, %v1364
        %v1403 = vpack.c.b16 %v1367, %v1366
        %v1404 = vpack.c.b16 %v1369, %v1368
        %v1405 = vpack.c.b16 %v1371, %v1370
        %v1406 = vpack.c.b16 %v1373, %v1372
        %v1407 = vpack.c.b16 %v1375, %v1374
        %v1408 = vpack.c.b16 %v1377, %v1376
        %v1409 = vpack.c.b16 %v1379, %v1378
        %v1410 = vpack.c.b16 %v1381, %v1380
        %v1411 = vpack.c.b16 %v1383, %v1382
        %v1412 = vpack.c.b16 %v1385, %v1384
        %v1413 = vpack.c.b16 %v1387, %v1386
        %v1414 = vpack.c.b16 %v1389, %v1388
        %v1415 = vpack.c.b16 %v1391, %v1390
        %1440 = vmatpush.bf16.msra.mxu0 %v1399
        %1441 = vmatpush.bf16.msra.mxu0 %v1398
        %1442 = vmatpush.bf16.msra.mxu0 %v1397
        %1443 = vmatpush.bf16.msra.mxu0 %v1396
        %1444 = vmatpush.bf16.msra.mxu0 %v1395
        %1445 = vmatpush.bf16.msra.mxu0 %v1394
        %1446 = vmatpush.bf16.msra.mxu0 %v1393
        %1447 = vmatpush.bf16.msra.mxu0 %v1392
        %1448 = vmatmul.bf16.gmra.mxu0 %v1272
        %v1449 = vpop.f32.mrf.mxu0
        %v1450 = vadd.f32 %v1248, %v1449
        %v1451 = vpop.f32.mrf.mxu0
        %v1452 = vadd.f32 %v1250, %v1451
        %1453 = vmatmul.bf16.gmra.mxu0 %v1275
        %v1454 = vpop.f32.mrf.mxu0
        %v1455 = vadd.f32 %v1253, %v1454
        %v1456 = vpop.f32.mrf.mxu0
        %v1457 = vadd.f32 %v1255, %v1456
        %1458 = vmatmul.bf16.gmra.mxu0 %v1278
        %v1459 = vpop.f32.mrf.mxu0
        %v1460 = vadd.f32 %v1258, %v1459
        %v1461 = vpop.f32.mrf.mxu0
        %v1462 = vadd.f32 %v1260, %v1461
        %1463 = vmatmul.bf16.gmra.mxu0 %v1281
        %v1464 = vpop.f32.mrf.mxu0
        %v1465 = vadd.f32 %v1263, %v1464
        %v1466 = vpop.f32.mrf.mxu0
        %v1467 = vadd.f32 %v1265, %v1466
        %1468 = vdwg.mxu0
        %1469 = vmatpush.bf16.msra.mxu0 %v1407
        %1470 = vmatpush.bf16.msra.mxu0 %v1406
        %1471 = vmatpush.bf16.msra.mxu0 %v1405
        %1472 = vmatpush.bf16.msra.mxu0 %v1404
        %1473 = vmatpush.bf16.msra.mxu0 %v1403
        %1474 = vmatpush.bf16.msra.mxu0 %v1402
        %1475 = vmatpush.bf16.msra.mxu0 %v1401
        %1476 = vmatpush.bf16.msra.mxu0 %v1400
        %1477 = vmatmul.bf16.gmra.mxu0 %v1273
        %v1478 = vpop.f32.mrf.mxu0
        %v1479 = vadd.f32 %v1450, %v1478
        %v1480 = vpop.f32.mrf.mxu0
        %v1481 = vadd.f32 %v1452, %v1480
        %1482 = vmatmul.bf16.gmra.mxu0 %v1276
        %v1483 = vpop.f32.mrf.mxu0
        %v1484 = vadd.f32 %v1455, %v1483
        %v1485 = vpop.f32.mrf.mxu0
        %v1486 = vadd.f32 %v1457, %v1485
        %1487 = vmatmul.bf16.gmra.mxu0 %v1279
        %v1488 = vpop.f32.mrf.mxu0
        %v1489 = vadd.f32 %v1460, %v1488
        %v1490 = vpop.f32.mrf.mxu0
        %v1491 = vadd.f32 %v1462, %v1490
        %1492 = vmatmul.bf16.gmra.mxu0 %v1282
        %v1493 = vpop.f32.mrf.mxu0
        %v1494 = vadd.f32 %v1465, %v1493
        %v1495 = vpop.f32.mrf.mxu0
        %v1496 = vadd.f32 %v1467, %v1495
        %1497 = vdwg.mxu0
        %1498 = vmatpush.bf16.msra.mxu0 %v1415
        %1499 = vmatpush.bf16.msra.mxu0 %v1414
        %1500 = vmatpush.bf16.msra.mxu0 %v1413
        %1501 = vmatpush.bf16.msra.mxu0 %v1412
        %1502 = vmatpush.bf16.msra.mxu0 %v1411
        %1503 = vmatpush.bf16.msra.mxu0 %v1410
        %1504 = vmatpush.bf16.msra.mxu0 %v1409
        %1505 = vmatpush.bf16.msra.mxu0 %v1408
        %1506 = vmatmul.bf16.gmra.mxu0 %v1274
        %v1507 = vpop.f32.mrf.mxu0
        %v1508 = vadd.f32 %v1479, %v1507
        %v1509 = vpop.f32.mrf.mxu0
        %v1510 = vadd.f32 %v1481, %v1509
        %1511 = vmatmul.bf16.gmra.mxu0 %v1277
        %v1512 = vpop.f32.mrf.mxu0
        %v1513 = vadd.f32 %v1484, %v1512
        %v1514 = vpop.f32.mrf.mxu0
        %v1515 = vadd.f32 %v1486, %v1514
        %1516 = vmatmul.bf16.gmra.mxu0 %v1280
        %v1517 = vpop.f32.mrf.mxu0
        %v1518 = vadd.f32 %v1489, %v1517
        %v1519 = vpop.f32.mrf.mxu0
        %v1520 = vadd.f32 %v1491, %v1519
        %1521 = vmatmul.bf16.gmra.mxu0 %v1283
        %v1522 = vpop.f32.mrf.mxu0
        %v1523 = vadd.f32 %v1494, %v1522
        %v1524 = vpop.f32.mrf.mxu0
        %v1525 = vadd.f32 %v1496, %v1524
        %1526 = vdwg.mxu0
        %v1527 = vld [vmem:[#allocation3 + $0x18] sm:$0xff]
        %v1528 = vld [vmem:[#allocation3 + $0x20] sm:$0xf]
        %v1529 = vld [vmem:[#allocation3 + $0x24] sm:$0xff]
        %v1530 = vld [vmem:[#allocation3 + $0x2c] sm:$0xf]
        %v1531 = vld [vmem:[#allocation3 + $0x30] sm:$0xff]
        %v1532 = vld [vmem:[#allocation3 + $0x38] sm:$0xf]
        %v1533 = vld [vmem:[#allocation3 + $0x3c] sm:$0xff]
        %v1534 = vld [vmem:[#allocation3 + $0x44] sm:$0xf]
        %v1535 = vld [vmem:[#allocation3 + $0x48] sm:$0xff]
        %v1536 = vld [vmem:[#allocation3 + $0x50] sm:$0xf]
        %v1537 = vld [vmem:[#allocation3 + $0x54] sm:$0xff]
        %v1538 = vld [vmem:[#allocation3 + $0x5c] sm:$0xf]
        %v1539 = vld [vmem:[#allocation3 + $0x60] sm:$0xff]
        %v1540 = vld [vmem:[#allocation3 + $0x68] sm:$0xf]
        %v1541 = vld [vmem:[#allocation3 + $0x6c] sm:$0xff]
        %v1542 = vld [vmem:[#allocation3 + $0x74] sm:$0xf]
        %s1543 = scalar_lea.vmem [#allocation8], 384
        %v1544 = vld [vmem:[%s1543] sm:$0xf]
        %v1545 = vld [vmem:[%s1543 + $0x4] sm:$0xf]
        %v1546 = vld [vmem:[%s1543 + $0x8] sm:$0xf]
        %v1547 = vld [vmem:[%s1543 + $0xc] sm:$0xf]
        %v1548 = vld [vmem:[%s1543 + $0x10] sm:$0xf]
        %v1549 = vld [vmem:[%s1543 + $0x14] sm:$0xf]
        %v1550 = vld [vmem:[%s1543 + $0x18] sm:$0xf]
        %v1551 = vld [vmem:[%s1543 + $0x1c] sm:$0xf]
        %v1552 = vld [vmem:[%s1543 + $0x20] sm:$0xf]
        %v1553 = vld [vmem:[%s1543 + $0x24] sm:$0xf]
        %v1554 = vld [vmem:[%s1543 + $0x28] sm:$0xf]
        %v1555 = vld [vmem:[%s1543 + $0x2c] sm:$0xf]
        %v1556 = vld [vmem:[%s1543 + $0x30] sm:$0xf]
        %v1557 = vld [vmem:[%s1543 + $0x34] sm:$0xf]
        %v1558 = vld [vmem:[%s1543 + $0x38] sm:$0xf]
        %v1559 = vld [vmem:[%s1543 + $0x3c] sm:$0xf]
        %v1560 = vld [vmem:[%s1543 + $0x40] sm:$0xf]
        %v1561 = vld [vmem:[%s1543 + $0x44] sm:$0xf]
        %v1562 = vld [vmem:[%s1543 + $0x48] sm:$0xf]
        %v1563 = vld [vmem:[%s1543 + $0x4c] sm:$0xf]
        %v1564 = vld [vmem:[%s1543 + $0x50] sm:$0xf]
        %v1565 = vld [vmem:[%s1543 + $0x54] sm:$0xf]
        %v1566 = vld [vmem:[%s1543 + $0x58] sm:$0xf]
        %v1567 = vld [vmem:[%s1543 + $0x5c] sm:$0xf]
        %v1568 = vld [vmem:[%s1543 + $0x60] sm:$0xf]
        %v1569 = vld [vmem:[%s1543 + $0x64] sm:$0xf]
        %v1570 = vld [vmem:[%s1543 + $0x68] sm:$0xf]
        %v1571 = vld [vmem:[%s1543 + $0x6c] sm:$0xf]
        %v1572 = vld [vmem:[%s1543 + $0x70] sm:$0xf]
        %v1573 = vld [vmem:[%s1543 + $0x74] sm:$0xf]
        %v1574 = vld [vmem:[%s1543 + $0x78] sm:$0xf]
        %v1575 = vld [vmem:[%s1543 + $0x7c] sm:$0xf]
        %v1576 = vld [vmem:[%s1543 + $0x80] sm:$0xf]
        %v1577 = vld [vmem:[%s1543 + $0x84] sm:$0xf]
        %v1578 = vld [vmem:[%s1543 + $0x88] sm:$0xf]
        %v1579 = vld [vmem:[%s1543 + $0x8c] sm:$0xf]
        %v1580 = vld [vmem:[%s1543 + $0x90] sm:$0xf]
        %v1581 = vld [vmem:[%s1543 + $0x94] sm:$0xf]
        %v1582 = vld [vmem:[%s1543 + $0x98] sm:$0xf]
        %v1583 = vld [vmem:[%s1543 + $0x9c] sm:$0xf]
        %v1584 = vld [vmem:[%s1543 + $0xa0] sm:$0xf]
        %v1585 = vld [vmem:[%s1543 + $0xa4] sm:$0xf]
        %v1586 = vld [vmem:[%s1543 + $0xa8] sm:$0xf]
        %v1587 = vld [vmem:[%s1543 + $0xac] sm:$0xf]
        %v1588 = vld [vmem:[%s1543 + $0xb0] sm:$0xf]
        %v1589 = vld [vmem:[%s1543 + $0xb4] sm:$0xf]
        %v1590 = vld [vmem:[%s1543 + $0xb8] sm:$0xf]
        %v1591 = vld [vmem:[%s1543 + $0xbc] sm:$0xf]
        %v1608 = vunpack.c.l.b16 %v1527
        %v1609 = vunpack.c.h.b16 %v1527
        %v1610 = vunpack.c.l.b16 %v1528
        %v1611 = vunpack.c.l.b16 %v1529
        %v1612 = vunpack.c.h.b16 %v1529
        %v1613 = vunpack.c.l.b16 %v1530
        %v1614 = vunpack.c.l.b16 %v1531
        %v1615 = vunpack.c.h.b16 %v1531
        %v1616 = vunpack.c.l.b16 %v1532
        %v1617 = vunpack.c.l.b16 %v1533
        %v1618 = vunpack.c.h.b16 %v1533
        %v1619 = vunpack.c.l.b16 %v1534
        %v1620 = vunpack.c.l.b16 %v1535
        %v1621 = vunpack.c.h.b16 %v1535
        %v1622 = vunpack.c.l.b16 %v1536
        %v1623 = vunpack.c.l.b16 %v1537
        %v1624 = vunpack.c.h.b16 %v1537
        %v1625 = vunpack.c.l.b16 %v1538
        %v1626 = vunpack.c.l.b16 %v1539
        %v1627 = vunpack.c.h.b16 %v1539
        %v1628 = vunpack.c.l.b16 %v1540
        %v1629 = vunpack.c.l.b16 %v1541
        %v1630 = vunpack.c.h.b16 %v1541
        %v1631 = vunpack.c.l.b16 %v1542
        %v1632 = vpack.c.b16 %v1611, %v1608
        %v1633 = vpack.c.b16 %v1612, %v1609
        %v1634 = vpack.c.b16 %v1613, %v1610
        %v1635 = vpack.c.b16 %v1617, %v1614
        %v1636 = vpack.c.b16 %v1618, %v1615
        %v1637 = vpack.c.b16 %v1619, %v1616
        %v1638 = vpack.c.b16 %v1623, %v1620
        %v1639 = vpack.c.b16 %v1624, %v1621
        %v1640 = vpack.c.b16 %v1625, %v1622
        %v1641 = vpack.c.b16 %v1629, %v1626
        %v1642 = vpack.c.b16 %v1630, %v1627
        %v1643 = vpack.c.b16 %v1631, %v1628
        %v1704 = vunpack.c.l.b16 %v1544
        %v1705 = vunpack.c.l.b16 %v1545
        %v1706 = vunpack.c.l.b16 %v1546
        %v1707 = vunpack.c.l.b16 %v1547
        %v1708 = vunpack.c.l.b16 %v1548
        %v1709 = vunpack.c.l.b16 %v1549
        %v1710 = vunpack.c.l.b16 %v1550
        %v1711 = vunpack.c.l.b16 %v1551
        %v1712 = vunpack.c.l.b16 %v1552
        %v1713 = vunpack.c.l.b16 %v1553
        %v1714 = vunpack.c.l.b16 %v1554
        %v1715 = vunpack.c.l.b16 %v1555
        %v1716 = vunpack.c.l.b16 %v1556
        %v1717 = vunpack.c.l.b16 %v1557
        %v1718 = vunpack.c.l.b16 %v1558
        %v1719 = vunpack.c.l.b16 %v1559
        %v1720 = vunpack.c.l.b16 %v1560
        %v1721 = vunpack.c.l.b16 %v1561
        %v1722 = vunpack.c.l.b16 %v1562
        %v1723 = vunpack.c.l.b16 %v1563
        %v1724 = vunpack.c.l.b16 %v1564
        %v1725 = vunpack.c.l.b16 %v1565
        %v1726 = vunpack.c.l.b16 %v1566
        %v1727 = vunpack.c.l.b16 %v1567
        %v1728 = vunpack.c.l.b16 %v1568
        %v1729 = vunpack.c.l.b16 %v1569
        %v1730 = vunpack.c.l.b16 %v1570
        %v1731 = vunpack.c.l.b16 %v1571
        %v1732 = vunpack.c.l.b16 %v1572
        %v1733 = vunpack.c.l.b16 %v1573
        %v1734 = vunpack.c.l.b16 %v1574
        %v1735 = vunpack.c.l.b16 %v1575
        %v1736 = vunpack.c.l.b16 %v1576
        %v1737 = vunpack.c.l.b16 %v1577
        %v1738 = vunpack.c.l.b16 %v1578
        %v1739 = vunpack.c.l.b16 %v1579
        %v1740 = vunpack.c.l.b16 %v1580
        %v1741 = vunpack.c.l.b16 %v1581
        %v1742 = vunpack.c.l.b16 %v1582
        %v1743 = vunpack.c.l.b16 %v1583
        %v1744 = vunpack.c.l.b16 %v1584
        %v1745 = vunpack.c.l.b16 %v1585
        %v1746 = vunpack.c.l.b16 %v1586
        %v1747 = vunpack.c.l.b16 %v1587
        %v1748 = vunpack.c.l.b16 %v1588
        %v1749 = vunpack.c.l.b16 %v1589
        %v1750 = vunpack.c.l.b16 %v1590
        %v1751 = vunpack.c.l.b16 %v1591
        %v1752 = vpack.c.b16 %v1705, %v1704
        %v1753 = vpack.c.b16 %v1707, %v1706
        %v1754 = vpack.c.b16 %v1709, %v1708
        %v1755 = vpack.c.b16 %v1711, %v1710
        %v1756 = vpack.c.b16 %v1713, %v1712
        %v1757 = vpack.c.b16 %v1715, %v1714
        %v1758 = vpack.c.b16 %v1717, %v1716
        %v1759 = vpack.c.b16 %v1719, %v1718
        %v1760 = vpack.c.b16 %v1721, %v1720
        %v1761 = vpack.c.b16 %v1723, %v1722
        %v1762 = vpack.c.b16 %v1725, %v1724
        %v1763 = vpack.c.b16 %v1727, %v1726
        %v1764 = vpack.c.b16 %v1729, %v1728
        %v1765 = vpack.c.b16 %v1731, %v1730
        %v1766 = vpack.c.b16 %v1733, %v1732
        %v1767 = vpack.c.b16 %v1735, %v1734
        %v1768 = vpack.c.b16 %v1737, %v1736
        %v1769 = vpack.c.b16 %v1739, %v1738
        %v1770 = vpack.c.b16 %v1741, %v1740
        %v1771 = vpack.c.b16 %v1743, %v1742
        %v1772 = vpack.c.b16 %v1745, %v1744
        %v1773 = vpack.c.b16 %v1747, %v1746
        %v1774 = vpack.c.b16 %v1749, %v1748
        %v1775 = vpack.c.b16 %v1751, %v1750
        %1800 = vmatpush.bf16.msra.mxu0 %v1759
        %1801 = vmatpush.bf16.msra.mxu0 %v1758
        %1802 = vmatpush.bf16.msra.mxu0 %v1757
        %1803 = vmatpush.bf16.msra.mxu0 %v1756
        %1804 = vmatpush.bf16.msra.mxu0 %v1755
        %1805 = vmatpush.bf16.msra.mxu0 %v1754
        %1806 = vmatpush.bf16.msra.mxu0 %v1753
        %1807 = vmatpush.bf16.msra.mxu0 %v1752
        %1808 = vmatmul.bf16.gmra.mxu0 %v1632
        %v1809 = vpop.f32.mrf.mxu0
        %v1810 = vadd.f32 0.0, %v1809
        %v1811 = vpop.f32.mrf.mxu0
        %v1812 = vadd.f32 0.0, %v1811
        %1813 = vmatmul.bf16.gmra.mxu0 %v1635
        %v1814 = vpop.f32.mrf.mxu0
        %v1815 = vadd.f32 0.0, %v1814
        %v1816 = vpop.f32.mrf.mxu0
        %v1817 = vadd.f32 0.0, %v1816
        %1818 = vmatmul.bf16.gmra.mxu0 %v1638
        %v1819 = vpop.f32.mrf.mxu0
        %v1820 = vadd.f32 0.0, %v1819
        %v1821 = vpop.f32.mrf.mxu0
        %v1822 = vadd.f32 0.0, %v1821
        %1823 = vmatmul.bf16.gmra.mxu0 %v1641
        %v1824 = vpop.f32.mrf.mxu0
        %v1825 = vadd.f32 0.0, %v1824
        %v1826 = vpop.f32.mrf.mxu0
        %v1827 = vadd.f32 0.0, %v1826
        %1828 = vdwg.mxu0
        %1829 = vmatpush.bf16.msra.mxu0 %v1767
        %1830 = vmatpush.bf16.msra.mxu0 %v1766
        %1831 = vmatpush.bf16.msra.mxu0 %v1765
        %1832 = vmatpush.bf16.msra.mxu0 %v1764
        %1833 = vmatpush.bf16.msra.mxu0 %v1763
        %1834 = vmatpush.bf16.msra.mxu0 %v1762
        %1835 = vmatpush.bf16.msra.mxu0 %v1761
        %1836 = vmatpush.bf16.msra.mxu0 %v1760
        %1837 = vmatmul.bf16.gmra.mxu0 %v1633
        %v1838 = vpop.f32.mrf.mxu0
        %v1839 = vadd.f32 %v1810, %v1838
        %v1840 = vpop.f32.mrf.mxu0
        %v1841 = vadd.f32 %v1812, %v1840
        %1842 = vmatmul.bf16.gmra.mxu0 %v1636
        %v1843 = vpop.f32.mrf.mxu0
        %v1844 = vadd.f32 %v1815, %v1843
        %v1845 = vpop.f32.mrf.mxu0
        %v1846 = vadd.f32 %v1817, %v1845
        %1847 = vmatmul.bf16.gmra.mxu0 %v1639
        %v1848 = vpop.f32.mrf.mxu0
        %v1849 = vadd.f32 %v1820, %v1848
        %v1850 = vpop.f32.mrf.mxu0
        %v1851 = vadd.f32 %v1822, %v1850
        %1852 = vmatmul.bf16.gmra.mxu0 %v1642
        %v1853 = vpop.f32.mrf.mxu0
        %v1854 = vadd.f32 %v1825, %v1853
        %v1855 = vpop.f32.mrf.mxu0
        %v1856 = vadd.f32 %v1827, %v1855
        %1857 = vdwg.mxu0
        %1858 = vmatpush.bf16.msra.mxu0 %v1775
        %1859 = vmatpush.bf16.msra.mxu0 %v1774
        %1860 = vmatpush.bf16.msra.mxu0 %v1773
        %1861 = vmatpush.bf16.msra.mxu0 %v1772
        %1862 = vmatpush.bf16.msra.mxu0 %v1771
        %1863 = vmatpush.bf16.msra.mxu0 %v1770
        %1864 = vmatpush.bf16.msra.mxu0 %v1769
        %1865 = vmatpush.bf16.msra.mxu0 %v1768
        %1866 = vmatmul.bf16.gmra.mxu0 %v1634
        %v1867 = vpop.f32.mrf.mxu0
        %v1868 = vadd.f32 %v1839, %v1867
        %v1869 = vpop.f32.mrf.mxu0
        %v1870 = vadd.f32 %v1841, %v1869
        %1871 = vmatmul.bf16.gmra.mxu0 %v1637
        %v1872 = vpop.f32.mrf.mxu0
        %v1873 = vadd.f32 %v1844, %v1872
        %v1874 = vpop.f32.mrf.mxu0
        %v1875 = vadd.f32 %v1846, %v1874
        %1876 = vmatmul.bf16.gmra.mxu0 %v1640
        %v1877 = vpop.f32.mrf.mxu0
        %v1878 = vadd.f32 %v1849, %v1877
        %v1879 = vpop.f32.mrf.mxu0
        %v1880 = vadd.f32 %v1851, %v1879
        %1881 = vmatmul.bf16.gmra.mxu0 %v1643
        %v1882 = vpop.f32.mrf.mxu0
        %v1883 = vadd.f32 %v1854, %v1882
        %v1884 = vpop.f32.mrf.mxu0
        %v1885 = vadd.f32 %v1856, %v1884
        %1886 = vdwg.mxu0
        %v1887 = vadd.f32 %v1508, %v1868
        %v1888 = vadd.f32 %v1510, %v1870
        %v1889 = vadd.f32 %v1513, %v1873
        %v1890 = vadd.f32 %v1515, %v1875
        %v1891 = vadd.f32 %v1518, %v1878
        %v1892 = vadd.f32 %v1520, %v1880
        %v1893 = vadd.f32 %v1523, %v1883
        %v1894 = vadd.f32 %v1525, %v1885
        %v1895 = vld [vmem:[%s4] sm:$0x1]
        %v1897 = vperm.slane %v1895, 0
        %v1899 = vadd.f32 %v1887, %v1897
        %v1900 = vadd.f32 %v1888, %v1897
        %v1901 = vadd.f32 %v1889, %v1897
        %v1902 = vadd.f32 %v1890, %v1897
        %v1903 = vadd.f32 %v1891, %v1897
        %v1904 = vadd.f32 %v1892, %v1897
        %v1905 = vadd.f32 %v1893, %v1897
        %v1906 = vadd.f32 %v1894, %v1897
        %v1907 = vpack.c.bf16 %v1900, %v1899
        %v1908 = vpack.c.bf16 %v1902, %v1901
        %v1909 = vpack.c.bf16 %v1904, %v1903
        %v1910 = vpack.c.bf16 %v1906, %v1905
        %v1911 = vld [vmem:[#allocation10] sm:$0xf]
        %v1912 = vld [vmem:[#allocation10 + $0x4] sm:$0xf]
        %v1913 = vld [vmem:[#allocation10 + $0x8] sm:$0xf]
        %v1914 = vld [vmem:[#allocation10 + $0xc] sm:$0xf]
        %v1915 = vld [vmem:[#allocation10 + $0x10] sm:$0xf]
        %v1916 = vld [vmem:[#allocation10 + $0x14] sm:$0xf]
        %v1917 = vld [vmem:[#allocation10 + $0x18] sm:$0xf]
        %v1918 = vld [vmem:[#allocation10 + $0x1c] sm:$0xf]
        %v1919 = vld [vmem:[#allocation10 + $0x20] sm:$0xf]
        %v1920 = vld [vmem:[#allocation10 + $0x24] sm:$0xf]
        %v1921 = vld [vmem:[#allocation10 + $0x28] sm:$0xf]
        %v1922 = vld [vmem:[#allocation10 + $0x2c] sm:$0xf]
        %v1923 = vld [vmem:[#allocation10 + $0x30] sm:$0xf]
        %v1924 = vld [vmem:[#allocation10 + $0x34] sm:$0xf]
        %v1925 = vld [vmem:[#allocation10 + $0x38] sm:$0xf]
        %v1926 = vld [vmem:[#allocation10 + $0x3c] sm:$0xf]
        %v1927 = vld [vmem:[%s6] sm:$0x1]
        %v1929 = vperm.slane %v1927, 0
        %v1947 = vunpack.c.l.b16 %v1911
        %v1948 = vunpack.c.l.b16 %v1912
        %v1949 = vunpack.c.l.b16 %v1913
        %v1950 = vunpack.c.l.b16 %v1914
        %v1951 = vunpack.c.l.b16 %v1915
        %v1952 = vunpack.c.l.b16 %v1916
        %v1953 = vunpack.c.l.b16 %v1917
        %v1954 = vunpack.c.l.b16 %v1918
        %v1955 = vunpack.c.l.b16 %v1919
        %v1956 = vunpack.c.l.b16 %v1920
        %v1957 = vunpack.c.l.b16 %v1921
        %v1958 = vunpack.c.l.b16 %v1922
        %v1959 = vunpack.c.l.b16 %v1923
        %v1960 = vunpack.c.l.b16 %v1924
        %v1961 = vunpack.c.l.b16 %v1925
        %v1962 = vunpack.c.l.b16 %v1926
        %v1963 = vpack.c.b16 %v1948, %v1947
        %v1964 = vpack.c.b16 %v1950, %v1949
        %v1965 = vpack.c.b16 %v1952, %v1951
        %v1966 = vpack.c.b16 %v1954, %v1953
        %v1967 = vpack.c.b16 %v1956, %v1955
        %v1968 = vpack.c.b16 %v1958, %v1957
        %v1969 = vpack.c.b16 %v1960, %v1959
        %v1970 = vpack.c.b16 %v1962, %v1961
        %1979 = vmatpush.bf16.msra.mxu0 %v1970
        %1980 = vmatpush.bf16.msra.mxu0 %v1969
        %1981 = vmatpush.bf16.msra.mxu0 %v1968
        %1982 = vmatpush.bf16.msra.mxu0 %v1967
        %1983 = vmatpush.bf16.msra.mxu0 %v1966
        %1984 = vmatpush.bf16.msra.mxu0 %v1965
        %1985 = vmatpush.bf16.msra.mxu0 %v1964
        %1986 = vmatpush.bf16.msra.mxu0 %v1963
        %1987 = vmatmul.bf16.gmra.mxu0 %v1907
        %v1988 = vpop.f32.mrf.mxu0
        %v1989 = vadd.f32 %v1929, %v1988
        %v1990 = vpop.f32.mrf.mxu0
        %v1991 = vadd.f32 %v1929, %v1990
        %1992 = vmatmul.bf16.gmra.mxu0 %v1908
        %v1993 = vpop.f32.mrf.mxu0
        %v1994 = vadd.f32 %v1929, %v1993
        %v1995 = vpop.f32.mrf.mxu0
        %v1996 = vadd.f32 %v1929, %v1995
        %1997 = vmatmul.bf16.gmra.mxu0 %v1909
        %v1998 = vpop.f32.mrf.mxu0
        %v1999 = vadd.f32 %v1929, %v1998
        %v2000 = vpop.f32.mrf.mxu0
        %v2001 = vadd.f32 %v1929, %v2000
        %2002 = vmatmul.bf16.gmra.mxu0 %v1910
        %v2003 = vpop.f32.mrf.mxu0
        %v2004 = vadd.f32 %v1929, %v2003
        %v2005 = vpop.f32.mrf.mxu0
        %v2006 = vadd.f32 %v1929, %v2005
        %2007 = vdwg.mxu0
        %v2008 = vld [vmem:[#allocation11] sm:$0xf]
        %v2009 = vld [vmem:[#allocation11 + $0x4] sm:$0xf]
        %v2010 = vld [vmem:[#allocation11 + $0x8] sm:$0xf]
        %v2011 = vld [vmem:[#allocation11 + $0xc] sm:$0xf]
        %v2012 = vld [vmem:[#allocation11 + $0x10] sm:$0xf]
        %v2013 = vld [vmem:[#allocation11 + $0x14] sm:$0xf]
        %v2014 = vld [vmem:[#allocation11 + $0x18] sm:$0xf]
        %v2015 = vld [vmem:[#allocation11 + $0x1c] sm:$0xf]
        %v2016 = vld [vmem:[#allocation11 + $0x20] sm:$0xf]
        %v2017 = vld [vmem:[#allocation11 + $0x24] sm:$0xf]
        %v2018 = vld [vmem:[#allocation11 + $0x28] sm:$0xf]
        %v2019 = vld [vmem:[#allocation11 + $0x2c] sm:$0xf]
        %v2020 = vld [vmem:[#allocation11 + $0x30] sm:$0xf]
        %v2021 = vld [vmem:[#allocation11 + $0x34] sm:$0xf]
        %v2022 = vld [vmem:[#allocation11 + $0x38] sm:$0xf]
        %v2023 = vld [vmem:[#allocation11 + $0x3c] sm:$0xf]
        %v2024 = vld [vmem:[%s8] sm:$0x1]
        %v2026 = vperm.slane %v2024, 0
        %v2028 = vpack.c.b16 %v479, %v478
        %v2029 = vpack.c.b16 %v481, %v480
        %v2030 = vpack.c.b16 %v483, %v482
        %v2031 = vpack.c.b16 %v485, %v484
        %v2052 = vunpack.c.l.b16 %v2008
        %v2053 = vunpack.c.l.b16 %v2009
        %v2054 = vunpack.c.l.b16 %v2010
        %v2055 = vunpack.c.l.b16 %v2011
        %v2056 = vunpack.c.l.b16 %v2012
        %v2057 = vunpack.c.l.b16 %v2013
        %v2058 = vunpack.c.l.b16 %v2014
        %v2059 = vunpack.c.l.b16 %v2015
        %v2060 = vunpack.c.l.b16 %v2016
        %v2061 = vunpack.c.l.b16 %v2017
        %v2062 = vunpack.c.l.b16 %v2018
        %v2063 = vunpack.c.l.b16 %v2019
        %v2064 = vunpack.c.l.b16 %v2020
        %v2065 = vunpack.c.l.b16 %v2021
        %v2066 = vunpack.c.l.b16 %v2022
        %v2067 = vunpack.c.l.b16 %v2023
        %v2068 = vpack.c.b16 %v2053, %v2052
        %v2069 = vpack.c.b16 %v2055, %v2054
        %v2070 = vpack.c.b16 %v2057, %v2056
        %v2071 = vpack.c.b16 %v2059, %v2058
        %v2072 = vpack.c.b16 %v2061, %v2060
        %v2073 = vpack.c.b16 %v2063, %v2062
        %v2074 = vpack.c.b16 %v2065, %v2064
        %v2075 = vpack.c.b16 %v2067, %v2066
        %2084 = vmatpush.bf16.msra.mxu0 %v2075
        %2085 = vmatpush.bf16.msra.mxu0 %v2074
        %2086 = vmatpush.bf16.msra.mxu0 %v2073
        %2087 = vmatpush.bf16.msra.mxu0 %v2072
        %2088 = vmatpush.bf16.msra.mxu0 %v2071
        %2089 = vmatpush.bf16.msra.mxu0 %v2070
        %2090 = vmatpush.bf16.msra.mxu0 %v2069
        %2091 = vmatpush.bf16.msra.mxu0 %v2068
        %2092 = vmatmul.bf16.gmra.mxu0 %v2028
        %v2093 = vpop.f32.mrf.mxu0
        %v2094 = vadd.f32 %v2026, %v2093
        %v2095 = vpop.f32.mrf.mxu0
        %v2096 = vadd.f32 %v2026, %v2095
        %2097 = vmatmul.bf16.gmra.mxu0 %v2029
        %v2098 = vpop.f32.mrf.mxu0
        %v2099 = vadd.f32 %v2026, %v2098
        %v2100 = vpop.f32.mrf.mxu0
        %v2101 = vadd.f32 %v2026, %v2100
        %2102 = vmatmul.bf16.gmra.mxu0 %v2030
        %v2103 = vpop.f32.mrf.mxu0
        %v2104 = vadd.f32 %v2026, %v2103
        %v2105 = vpop.f32.mrf.mxu0
        %v2106 = vadd.f32 %v2026, %v2105
        %2107 = vmatmul.bf16.gmra.mxu0 %v2031
        %v2108 = vpop.f32.mrf.mxu0
        %v2109 = vadd.f32 %v2026, %v2108
        %v2110 = vpop.f32.mrf.mxu0
        %v2111 = vadd.f32 %v2026, %v2110
        %2112 = vdwg.mxu0
        %v2113 = vadd.f32 %v1989, %v2094
        %v2114 = vadd.f32 %v1991, %v2096
        %v2115 = vadd.f32 %v1994, %v2099
        %v2116 = vadd.f32 %v1996, %v2101
        %v2117 = vadd.f32 %v1999, %v2104
        %v2118 = vadd.f32 %v2001, %v2106
        %v2119 = vadd.f32 %v2004, %v2109
        %v2120 = vadd.f32 %v2006, %v2111
        %v2121 = vmax.f32 %v2113, 0.0
        %v2122 = vmax.f32 %v2114, 0.0
        %v2123 = vmax.f32 %v2115, 0.0
        %v2124 = vmax.f32 %v2116, 0.0
        %v2125 = vmax.f32 %v2117, 0.0
        %v2126 = vmax.f32 %v2118, 0.0
        %v2127 = vmax.f32 %v2119, 0.0
        %v2128 = vmax.f32 %v2120, 0.0
        %2129 = vst [vmem:[%s365] sm:$0xff] %v2121
        %2130 = vst [vmem:[%s365 + $0x8] sm:$0xff] %v2122
        %2131 = vst [vmem:[%s365 + $0x10] sm:$0xff] %v2123
        %2132 = vst [vmem:[%s365 + $0x18] sm:$0xff] %v2124
        %2133 = vst [vmem:[%s365 + $0x20] sm:$0xff] %v2125
        %2134 = vst [vmem:[%s365 + $0x28] sm:$0xff] %v2126
        %2135 = vst [vmem:[%s365 + $0x30] sm:$0xff] %v2127
        %2136 = vst [vmem:[%s365 + $0x38] sm:$0xff] %v2128
        %s2137 = sand.u32 %s216, 1
        %s2138 = scalar_lea.sflag [#allocation7], %s2137
        %s2139 = sand.u32 %s216, 1
        %s2140 = smul.addr %s2139, 64
        %s2141 = scalar_lea.vmem [#allocation13], %s2140
        // Predicated region
        $region85: #{tpu_custom_call.1} parent=51 // pred_check
          %p2142 = pneg %p226
        $region86: #{tpu_custom_call.1} parent=51 // pred_check_branch
          %2144 = sbr.rel (%p2142) target = $region88
        $region87: #{tpu_custom_call.1} parent=51 // pred_region
          %s2145 = smul.u32 8, %s31
          %2147 = vsyncadd %s2138, 0
          %s2148 = smul.addr %s30, 8
          %s2149 = sadd.s32 %s2145, %s2148
          %s2150 = smul.addr %s2149, 8
          %s2151 = scalar_lea.hbm %s9, %s2150
          %s2152 = sshll.u32 %s2141, 4
          %s2153 = int_to_ptr.vmem [resolvable:$true] %s2152
          %s2154 = sshll.u32 %s2151, 4
          %s2155 = int_to_ptr.hbm [resolvable:$true] %s2154
          %2160 = dma.vmem_to_hbm [thread:$0]  %s2153, 1024, %s2155, %s2138, 128, 128, 8
        $region88: #{tpu_custom_call.1} parent=51 // pred_fallthru
          _
      $region52: #{tpu_custom_call.1} parent=5 // pred_fallthru
        _
      %p2161 = scmp.le.s32.totalorder 2, %s21
      // Predicated region
      $region89: #{tpu_custom_call.1} parent=5 // pred_check
        %p2162 = pneg %p2161
      $region90: #{tpu_custom_call.1} parent=5 // pred_check_branch
        %2164 = sbr.rel (%p2162) target = $region92
      $region91: #{tpu_custom_call.1} parent=5 // pred_region
        %s2165 = ssub.s32 %s21, 2
        // Predicated region
        $region93: #{tpu_custom_call.1} parent=91 // pred_check
          %p2166 = pneg %p232
        $region94: #{tpu_custom_call.1} parent=91 // pred_check_branch
          %2168 = sbr.rel (%p2166) target = $region96
        $region95: #{tpu_custom_call.1} parent=91 // pred_region
          %s2169 = sand.u32 %s217, 1
          %s2170 = scalar_lea.sflag [#allocation7], %s2169
          %s2171 = sand.u32 %s217, 1
          %s2172 = smul.addr %s2171, 64
          %s2173 = scalar_lea.vmem [#allocation13], %s2172
          %2175 = dma.done %s2170, 1024
        $region96: #{tpu_custom_call.1} parent=91 // pred_fallthru
          _
      $region92: #{tpu_custom_call.1} parent=5 // pred_fallthru
        _
    $region6: #{tpu_custom_call.1} parent=1 // loop_footer
      %s25 = sadd.s32 1, %s21
    $region7: #{tpu_custom_call.1} parent=1 // loop_footer_branch
      %20 = sbr.rel target = $region3
    $region8: #{tpu_custom_call.1} parent=1 // loop_exit
      _
    %2176 = vsyncpa [#allocation6], 1
    %s2177 = scalar_lea.sflag [#allocation6], 1
    %2178 = vsyncpa %s2177, 1
    %2179 = vsyncpa [#allocation9], 1
    %2180 = vsyncpa [#allocation12], 1
    %2181 = vsyncpa [#allocation7], 1
    %s2182 = scalar_lea.sflag [#allocation7], 1
    %2183 = vsyncpa %s2182, 1
  %2184 = vsyncmov [#allocation4]
  %s2185 = vpop.sfrf %2184
  %p2186 = scmp.eq.s32.totalorder %s2185, 0
  %p2187 = pneg %p2186
  %2189 = shalt.err (%p2187)
  %s2190 = scalar_lea.sflag [#allocation4], 1
  %2191 = vsyncmov %s2190
  %s2192 = vpop.sfrf %2191
  %p2193 = scmp.eq.s32.totalorder %s2192, 0
  %p2194 = pneg %p2193
  %2196 = shalt.err (%p2194)

</llo_original>
